<compile_context>
chip_gen: v7x
topology: tpu7x:2x2x1
jax: 0.10.0
libtpu: 0.0.40
codegen_flags: <defaults>
</compile_context>

<pallas_src>
import functools
import math

import jax
import jax.numpy as jnp
from jax import lax
from jax.experimental import pallas as pl
from jax.experimental.pallas import tpu as pltpu


VMEM_LIMIT = 48 * 1024 * 1024   # safe on v7x (64 MiB physical), plenty on v5e/v6e

TM_CAP = 512     # row tiles (sublane axis), multiple of 8
TN_CAP = 512     # output-lane tiles, multiple of 128
TK_CAP = 1024    # contraction tiles, multiple of 128
TF_CAP = 512     # dff tiles in the fused FFN


def _round_up(x, m):
    return ((x + m - 1) // m) * m


def _pick_tile(total, cap, mult=128):
    """Largest multiple of `mult` that divides `total` and is <= cap (total % mult == 0)."""
    t = min(cap, total)
    t = (t // mult) * mult
    while total % t != 0:
        t -= mult
    return t


def _cparams(*sems):
    return pltpu.CompilerParams(dimension_semantics=sems,
                                vmem_limit_bytes=VMEM_LIMIT)


# --------------------------------------------------------------------------------------
# Pallas kernels
# --------------------------------------------------------------------------------------
def _matmul_single_kernel(x_ref, w_ref, b_ref, o_ref):
    # o = x @ w + b when the whole K fits one tile (no reduction machinery).
    o_ref[...] = (jnp.dot(x_ref[...].astype(jnp.bfloat16), w_ref[...],
                          preferred_element_type=jnp.float32) + b_ref[...])


def _matmul_kernel(x_ref, w_ref, b_ref, o_ref):
    # o = x @ w + b tiled over (M, N, K); accumulate directly into the f32 output block.
    k = pl.program_id(2)

    @pl.when(k == 0)
    def _():
        o_ref[...] = jnp.broadcast_to(b_ref[...], o_ref.shape)

    o_ref[...] += jnp.dot(x_ref[...].astype(jnp.bfloat16), w_ref[...],
                          preferred_element_type=jnp.float32)


def _attn_wo_ln_kernel(qkv_ref, pad_ref, res_ref, wo_ref, bo_ref, g_ref, bt_ref,
                       o_ref, *, h, dk, dv, scale, inv_d, eps):
    # One batch element per grid step.  Fuses: multi-head masked attention over the
    # fused QKV slab, the Wo projection, bias, residual add and LayerNorm.
    qkv = qkv_ref[0]                    # [S, Tp]  f32 (lane-padded, pads zero)
    pad = pad_ref[0]                    # [1, S]   f32 (1.0 where key position is pad)
    res = res_ref[0]                    # [S, Dp]  f32 residual (pads zero)
    S = qkv.shape[0]

    row = lax.broadcasted_iota(jnp.int32, (S, S), 0)
    col = lax.broadcasted_iota(jnp.int32, (S, S), 1)
    disallow = jnp.logical_or(col > row, pad > 0.0)     # bool [S, S] (causal | padding)

    q_off, k_off, v_off = 0, h * dk, 2 * h * dk
    heads = []
    for hh in range(h):                                  # static unrolled head loop
        q_h = qkv[:, q_off + hh * dk: q_off + (hh + 1) * dk] * scale
        k_h = qkv[:, k_off + hh * dk: k_off + (hh + 1) * dk]
        v_h = qkv[:, v_off + hh * dv: v_off + (hh + 1) * dv]

        # contract on dim 1 of both operands (no k_h.T transpose)
        s = lax.dot_general(q_h.astype(jnp.bfloat16), k_h.astype(jnp.bfloat16),
                            dimension_numbers=(((1,), (1,)), ((), ())),
                            preferred_element_type=jnp.float32)
        s = jnp.where(disallow, -1e9, s)
        s = s - jnp.max(s, axis=-1, keepdims=True)
        p = jnp.exp(s)
        p = p * pl.reciprocal(jnp.sum(p, axis=-1, keepdims=True), approx=True)
        heads.append(jnp.dot(p.astype(jnp.bfloat16), v_h.astype(jnp.bfloat16),
                             preferred_element_type=jnp.float32))

    attn = jnp.concatenate(heads, axis=-1)               # [S, h*dv]
    proj = jnp.dot(attn.astype(jnp.bfloat16), wo_ref[...],
                   preferred_element_type=jnp.float32) + bo_ref[...]
    z = proj + res                                       # padded lanes are exactly zero

    mu = jnp.sum(z, axis=-1, keepdims=True) * inv_d
    var = jnp.sum(z * z, axis=-1, keepdims=True) * inv_d - mu * mu
    o_ref[0] = (z - mu) * lax.rsqrt(var + eps) * g_ref[...] + bt_ref[...]


def _ffn_ln_single_kernel(x_ref, w1_ref, b1_ref, w2_ref, b2_ref, g_ref, bt_ref,
                          o_ref, *, inv_d, eps):
    # o = LayerNorm(relu(x @ w1 + b1) @ w2 + b2 + x)   — dff fits one tile.
    x = x_ref[...]
    hid = jnp.dot(x.astype(jnp.bfloat16), w1_ref[...],
                  preferred_element_type=jnp.float32) + b1_ref[...]
    hid = jnp.maximum(hid, 0.0)
    y = jnp.dot(hid.astype(jnp.bfloat16), w2_ref[...],
                preferred_element_type=jnp.float32) + b2_ref[...]
    z = y + x
    mu = jnp.sum(z, axis=-1, keepdims=True) * inv_d
    var = jnp.sum(z * z, axis=-1, keepdims=True) * inv_d - mu * mu
    o_ref[...] = (z - mu) * lax.rsqrt(var + eps) * g_ref[...] + bt_ref[...]


def _ffn_ln_kernel(x_ref, w1_ref, b1_ref, w2_ref, b2_ref, g_ref, bt_ref,
                   o_ref, acc_ref, *, inv_d, eps):
    # Same as above but with dff tiled as a reduction axis (VMEM f32 accumulator).
    f = pl.program_id(1)

    @pl.when(f == 0)
    def _():
        acc_ref[...] = jnp.zeros_like(acc_ref)

    hid = jnp.dot(x_ref[...].astype(jnp.bfloat16), w1_ref[...],
                  preferred_element_type=jnp.float32) + b1_ref[...]
    hid = jnp.maximum(hid, 0.0)
    acc_ref[...] += jnp.dot(hid.astype(jnp.bfloat16), w2_ref[...],
                            preferred_element_type=jnp.float32)

    @pl.when(f == pl.num_programs(1) - 1)
    def _():
        z = acc_ref[...] + b2_ref[...] + x_ref[...]
        mu = jnp.sum(z, axis=-1, keepdims=True) * inv_d
        var = jnp.sum(z * z, axis=-1, keepdims=True) * inv_d - mu * mu
        o_ref[...] = (z - mu) * lax.rsqrt(var + eps) * g_ref[...] + bt_ref[...]


# --------------------------------------------------------------------------------------
# Pallas wrappers
# --------------------------------------------------------------------------------------
def pallas_matmul(x2d, w, b):
    """x2d @ w + b.  x2d f32 [M, Kp], w bf16 [Kp, Np], b f32 [1, Np] — pre-padded."""
    M, Kp = x2d.shape
    Kp2, Np = w.shape
    assert Kp == Kp2

    tm = min(TM_CAP, _round_up(M, 8))
    Mp = _round_up(M, tm)
    xp = x2d if Mp == M else jnp.pad(x2d, ((0, Mp - M), (0, 0)))
    tn = _pick_tile(Np, TN_CAP)
    tk = _pick_tile(Kp, TK_CAP)
    kg = Kp // tk

    if kg == 1:
        out = pl.pallas_call(
            _matmul_single_kernel,
            out_shape=jax.ShapeDtypeStruct((Mp, Np), jnp.float32),
            grid=(Mp // tm, Np // tn),
            in_specs=[
                pl.BlockSpec((tm, Kp), lambda i, j: (i, 0)),
                pl.BlockSpec((Kp, tn), lambda i, j: (0, j)),
                pl.BlockSpec((1, tn), lambda i, j: (0, j)),
            ],
            out_specs=pl.BlockSpec((tm, tn), lambda i, j: (i, j)),
            compiler_params=_cparams("parallel", "parallel"),
        )(xp, w, b)
    else:
        out = pl.pallas_call(
            _matmul_kernel,
            out_shape=jax.ShapeDtypeStruct((Mp, Np), jnp.float32),
            grid=(Mp // tm, Np // tn, kg),
            in_specs=[
                pl.BlockSpec((tm, tk), lambda i, j, k: (i, k)),
                pl.BlockSpec((tk, tn), lambda i, j, k: (k, j)),
                pl.BlockSpec((1, tn), lambda i, j, k: (0, j)),
            ],
            out_specs=pl.BlockSpec((tm, tn), lambda i, j, k: (i, j)),
            compiler_params=_cparams("parallel", "parallel", "arbitrary"),
        )(xp, w, b)
    return out if Mp == M else out[:M]


def pallas_attn_wo_ln(qkv3d, pad3d, res3d, wo, bo, gamma, beta, *, h, dk, dv, d, eps=1e-5):
    """Fused masked MHA + Wo projection + residual add + LayerNorm.  Output [B, S, Dp]."""
    B, S, Tp = qkv3d.shape
    Dp = res3d.shape[-1]
    kern = functools.partial(_attn_wo_ln_kernel, h=h, dk=dk, dv=dv,
                             scale=1.0 / math.sqrt(float(dk)),
                             inv_d=1.0 / float(d), eps=eps)
    return pl.pallas_call(
        kern,
        out_shape=jax.ShapeDtypeStruct((B, S, Dp), jnp.float32),
        grid=(B,),
        in_specs=[
            pl.BlockSpec((1, S, Tp), lambda b: (b, 0, 0)),
            pl.BlockSpec((1, 1, S), lambda b: (b, 0, 0)),
            pl.BlockSpec((1, S, Dp), lambda b: (b, 0, 0)),
            pl.BlockSpec((h * dv, Dp), lambda b: (0, 0)),
            pl.BlockSpec((1, Dp), lambda b: (0, 0)),
            pl.BlockSpec((1, Dp), lambda b: (0, 0)),
            pl.BlockSpec((1, Dp), lambda b: (0, 0)),
        ],
        out_specs=pl.BlockSpec((1, S, Dp), lambda b: (b, 0, 0)),
        compiler_params=_cparams("parallel"),
    )(qkv3d, pad3d, res3d, wo, bo, gamma, beta)


def pallas_ffn_ln(x2d, w1, b1, w2, b2, gamma, beta, *, d, eps=1e-5):
    """Fused FFN (w1 -> relu -> w2) + bias + residual add + LayerNorm."""
    M, Dp = x2d.shape
    Fp = w1.shape[1]
    tm = min(TM_CAP, _round_up(M, 8))
    Mp = _round_up(M, tm)
    xp = x2d if Mp == M else jnp.pad(x2d, ((0, Mp - M), (0, 0)))
    tf = _pick_tile(Fp, TF_CAP)
    fg = Fp // tf
    inv_d = 1.0 / float(d)

    if fg == 1:
        out = pl.pallas_call(
            functools.partial(_ffn_ln_single_kernel, inv_d=inv_d, eps=eps),
            out_shape=jax.ShapeDtypeStruct((Mp, Dp), jnp.float32),
            grid=(Mp // tm,),
            in_specs=[
                pl.BlockSpec((tm, Dp), lambda i: (i, 0)),
                pl.BlockSpec((Dp, Fp), lambda i: (0, 0)),
                pl.BlockSpec((1, Fp), lambda i: (0, 0)),
                pl.BlockSpec((Fp, Dp), lambda i: (0, 0)),
                pl.BlockSpec((1, Dp), lambda i: (0, 0)),
                pl.BlockSpec((1, Dp), lambda i: (0, 0)),
                pl.BlockSpec((1, Dp), lambda i: (0, 0)),
            ],
            out_specs=pl.BlockSpec((tm, Dp), lambda i: (i, 0)),
            compiler_params=_cparams("parallel"),
        )(xp, w1, b1, w2, b2, gamma, beta)
    else:
        out = pl.pallas_call(
            functools.partial(_ffn_ln_kernel, inv_d=inv_d, eps=eps),
            out_shape=jax.ShapeDtypeStruct((Mp, Dp), jnp.float32),
            grid=(Mp // tm, fg),
            in_specs=[
                pl.BlockSpec((tm, Dp), lambda i, f: (i, 0)),
                pl.BlockSpec((Dp, tf), lambda i, f: (0, f)),
                pl.BlockSpec((1, tf), lambda i, f: (0, f)),
                pl.BlockSpec((tf, Dp), lambda i, f: (f, 0)),
                pl.BlockSpec((1, Dp), lambda i, f: (0, 0)),
                pl.BlockSpec((1, Dp), lambda i, f: (0, 0)),
                pl.BlockSpec((1, Dp), lambda i, f: (0, 0)),
            ],
            out_specs=pl.BlockSpec((tm, Dp), lambda i, f: (i, 0)),
            scratch_shapes=[pltpu.VMEM((tm, Dp), jnp.float32)],
            compiler_params=_cparams("parallel", "arbitrary"),
        )(xp, w1, b1, w2, b2, gamma, beta)
    return out if Mp == M else out[:M]


# --------------------------------------------------------------------------------------
# Model glue (parameter setup, embeddings) — pure XLA, not the hot path
# --------------------------------------------------------------------------------------
def positional_encoding(seq_len, d_model, d_pad):
    pos = jnp.arange(seq_len, dtype=jnp.float32)[:, None]
    i = jnp.arange(d_model, dtype=jnp.float32)[None, :]
    angle = pos / jnp.power(10000.0, (2.0 * jnp.floor(i / 2.0)) / d_model)
    even = (jnp.arange(d_model)[None, :] % 2) == 0
    pe = jnp.where(even, jnp.sin(angle), jnp.cos(angle)).astype(jnp.float32)
    return jnp.pad(pe, ((0, 0), (0, d_pad - d_model)))


def init_params(key, dk, dv, h, d_model, dff, n, seq_length, number_vocabs):
    Dp = _round_up(d_model, 128)
    T = h * (2 * dk + dv)
    Tp = _round_up(T, 128)
    Fp = _round_up(dff, 128)
    Vp = _round_up(number_vocabs, 128)

    def dense(key, fan_in, fan_out, rpad, cpad):
        w = 0.02 * jax.random.normal(key, (fan_in, fan_out), jnp.float32)
        w = jnp.pad(w, ((0, rpad - fan_in), (0, cpad - fan_out))).astype(jnp.bfloat16)
        return w, jnp.zeros((1, cpad), jnp.float32)

    keys = jax.random.split(key, 2 + n)
    emb = 0.02 * jax.random.normal(keys[0], (number_vocabs, d_model), jnp.float32)
    params = {
        "embedding": jnp.pad(emb, ((0, 0), (0, Dp - d_model))),
        "pos_enc": positional_encoding(seq_length, d_model, Dp),
        "layers": [],
    }
    for l in range(n):
        k = jax.random.split(keys[1 + l], 6)
        # fused Q|K|V projection weight: one matmul instead of three
        wq = 0.02 * jax.random.normal(k[0], (d_model, h * dk), jnp.float32)
        wk = 0.02 * jax.random.normal(k[1], (d_model, h * dk), jnp.float32)
        wv = 0.02 * jax.random.normal(k[2], (d_model, h * dv), jnp.float32)
        wqkv = jnp.concatenate([wq, wk, wv], axis=1)
        wqkv = jnp.pad(wqkv, ((0, Dp - d_model), (0, Tp - T))).astype(jnp.bfloat16)
        wo, bo = dense(k[3], h * dv, d_model, h * dv, Dp)
        w1, bf1 = dense(k[4], d_model, dff, Dp, Fp)
        w2, bf2 = dense(k[5], dff, d_model, Fp, Dp)
        gamma = jnp.pad(jnp.ones((1, d_model), jnp.float32), ((0, 0), (0, Dp - d_model)))
        params["layers"].append({
            "wqkv": wqkv, "bqkv": jnp.zeros((1, Tp), jnp.float32),
            "wo": wo, "bo": bo,
            "w1": w1, "bf1": bf1, "w2": w2, "bf2": bf2,
            "g1": gamma, "b1ln": jnp.zeros((1, Dp), jnp.float32),
            "g2": gamma, "b2ln": jnp.zeros((1, Dp), jnp.float32),
        })
    wc, bc = dense(keys[-1], d_model, number_vocabs, Dp, Vp)
    params["w_conn"], params["b_conn"] = wc, bc
    return params


def gamma_gpt_forward(input_ids, params, *, dk, dv, h, d_model, number_vocabs):
    B, S = input_ids.shape
    Dp = params["embedding"].shape[1]

    # padding info only; the combined (padding | look-ahead) mask is built in-kernel.
    pad3d = (input_ids == 0).astype(jnp.float32).reshape(B, 1, S)

    # token embedding * sqrt(d_model) + sinusoidal positional encoding (gather = glue)
    x = params["embedding"][input_ids] * jnp.sqrt(jnp.float32(d_model))
    x = x + params["pos_enc"][:S][None, :, :]
    # dropout(rate=0.2) is identity since training=False

    x2 = x.reshape(B * S, Dp)
    for layer in params["layers"]:
        # fused Q|K|V projection -> [B*S, Tp] (lane-padded)
        qkv = pallas_matmul(x2, layer["wqkv"], layer["bqkv"])
        # fused attention + Wo + residual + LN1, lane-dense [B, S, Dp] store
        out1 = pallas_attn_wo_ln(qkv.reshape(B, S, -1), pad3d, x2.reshape(B, S, Dp),
                                 layer["wo"], layer["bo"], layer["g1"], layer["b1ln"],
                                 h=h, dk=dk, dv=dv, d=d_model)
        out1_2d = out1.reshape(B * S, Dp)
        # fused FFN + residual + LN2
        x2 = pallas_ffn_ln(out1_2d, layer["w1"], layer["bf1"], layer["w2"], layer["bf2"],
                           layer["g2"], layer["b2ln"], d=d_model)

    # final "connected" projection: d_model -> number_vocabs (lanes padded to 128)
    logits = pallas_matmul(x2, params["w_conn"], params["b_conn"])
    return logits.reshape(B, S, -1)[:, :, :number_vocabs]


# --------------------------------------------------------------------------------------
if __name__ == "__main__":
    # small config consistent with GammaGPT.__init__
    dk, dv, h = 8, 8, 4
    d_model, dff = 32, 64
    n_layers = 2
    seq_length = 8
    number_vocabs = 50
    batch = 2

    key = jax.random.PRNGKey(0)
    kin, kparam = jax.random.split(key)

    # token ids; include zeros so the padding mask is exercised
    input_ids = jax.random.randint(kin, (batch, seq_length), 1, number_vocabs, dtype=jnp.int32)
    input_ids = input_ids.at[:, -2:].set(0)

    params = init_params(kparam, dk, dv, h, d_model, dff, n_layers, seq_length, number_vocabs)

    fwd = jax.jit(functools.partial(gamma_gpt_forward, dk=dk, dv=dv, h=h,
                                    d_model=d_model, number_vocabs=number_vocabs))
    out = fwd(input_ids, params)
    out = jax.block_until_ready(out)

    assert out.shape == (batch, seq_length, number_vocabs)
    assert out.dtype == jnp.float32
    assert bool(jnp.all(jnp.isfinite(out)))
    print("KERNEL_OK")
</pallas_src>

<mosaic_0001>
module attributes {stable_mosaic.version = 11 : i64} {
  func.func @_matmul_single_kernel(%arg0: i32, %arg1: i32, %arg2: memref<16x128xf32, #tpu.memory_space<vmem>>, %arg3: memref<128x128xbf16, #tpu.memory_space<vmem>>, %arg4: memref<1x128xf32, #tpu.memory_space<vmem>>, %arg5: memref<16x128xf32, #tpu.memory_space<vmem>>) attributes {dimension_semantics = [#tpu.dimension_semantics<parallel>, #tpu.dimension_semantics<parallel>], iteration_bounds = array<i64: 1, 1>, scalar_prefetch = 0 : i64, scratch_operands = 0 : i64, tpu.core_type = #tpu.core_type<tc>, window_params = [{transform_indices = @transform_0, window_bounds = array<i64: 16, 128>}, {transform_indices = @transform_1, window_bounds = array<i64: 128, 128>}, {transform_indices = @transform_2, window_bounds = array<i64: 1, 128>}, {transform_indices = @transform_3, window_bounds = array<i64: 16, 128>}]} {
    %c0 = arith.constant 0 : index
    %c0_0 = arith.constant 0 : index
    %0 = vector.load %arg2[%c0, %c0_0] : memref<16x128xf32, #tpu.memory_space<vmem>>, vector<16x128xf32>
    %1 = arith.truncf %0 : vector<16x128xf32> to vector<16x128xbf16>
    %c0_1 = arith.constant 0 : index
    %c0_2 = arith.constant 0 : index
    %2 = vector.load %arg3[%c0_1, %c0_2] : memref<128x128xbf16, #tpu.memory_space<vmem>>, vector<128x128xbf16>
    %cst = arith.constant dense<0.000000e+00> : vector<16x128xf32>
    %3 = tpu.matmul %1, %2, %cst {dimension_numbers = #tpu.dot_dimension_numbers<[1], [0], [0], [1], [0, 0, 1, 1], [], []>} : vector<16x128xbf16>, vector<128x128xbf16>, vector<16x128xf32> -> vector<16x128xf32>
    %c0_3 = arith.constant 0 : index
    %c0_4 = arith.constant 0 : index
    %4 = vector.load %arg4[%c0_3, %c0_4] : memref<1x128xf32, #tpu.memory_space<vmem>>, vector<1x128xf32>
    %5 = vector.broadcast %4 : vector<1x128xf32> to vector<16x128xf32>
    %6 = arith.addf %3, %5 : vector<16x128xf32>
    %c0_5 = arith.constant 0 : index
    %c0_6 = arith.constant 0 : index
    %7 = vector.load %arg5[%c0_5, %c0_6] : memref<16x128xf32, #tpu.memory_space<vmem>>, vector<16x128xf32>
    tpu.vector_store %arg5[%c0_5, %c0_6], %6 {strides = array<i32>} : memref<16x128xf32, #tpu.memory_space<vmem>>, vector<16x128xf32>,
    return
  }
  func.func @transform_0(%arg0: i32, %arg1: i32) -> (i32, i32) {
    %c0_i32 = arith.constant 0 : i32
    %c0_i32_0 = arith.constant 0 : i32
    return %arg0, %c0_i32 : i32, i32
  }
  func.func @transform_1(%arg0: i32, %arg1: i32) -> (i32, i32) {
    %c0_i32 = arith.constant 0 : i32
    %c0_i32_0 = arith.constant 0 : i32
    return %c0_i32, %arg1 : i32, i32
  }
  func.func @transform_2(%arg0: i32, %arg1: i32) -> (i32, i32) {
    %c0_i32 = arith.constant 0 : i32
    %c0_i32_0 = arith.constant 0 : i32
    return %c0_i32, %arg1 : i32, i32
  }
  func.func @transform_3(%arg0: i32, %arg1: i32) -> (i32, i32) {
    %c0_i32 = arith.constant 0 : i32
    return %arg0, %arg1 : i32, i32
  }
}

module attributes {stable_mosaic.version = 11 : i64} {
  func.func @_ffn_ln_single_kernel(%arg0: i32, %arg1: memref<16x128xf32, #tpu.memory_space<vmem>>, %arg2: memref<128x128xbf16, #tpu.memory_space<vmem>>, %arg3: memref<1x128xf32, #tpu.memory_space<vmem>>, %arg4: memref<128x128xbf16, #tpu.memory_space<vmem>>, %arg5: memref<1x128xf32, #tpu.memory_space<vmem>>, %arg6: memref<1x128xf32, #tpu.memory_space<vmem>>, %arg7: memref<1x128xf32, #tpu.memory_space<vmem>>, %arg8: memref<16x128xf32, #tpu.memory_space<vmem>>) attributes {dimension_semantics = [#tpu.dimension_semantics<parallel>], iteration_bounds = array<i64: 1>, scalar_prefetch = 0 : i64, scratch_operands = 0 : i64, tpu.core_type = #tpu.core_type<tc>, window_params = [{transform_indices = @transform_0, window_bounds = array<i64: 16, 128>}, {pipeline_mode = #tpu.pipeline_mode<synchronous>, transform_indices = @transform_1, window_bounds = array<i64: 128, 128>}, {pipeline_mode = #tpu.pipeline_mode<synchronous>, transform_indices = @transform_2, window_bounds = array<i64: 1, 128>}, {pipeline_mode = #tpu.pipeline_mode<synchronous>, transform_indices = @transform_3, window_bounds = array<i64: 128, 128>}, {pipeline_mode = #tpu.pipeline_mode<synchronous>, transform_indices = @transform_4, window_bounds = array<i64: 1, 128>}, {pipeline_mode = #tpu.pipeline_mode<synchronous>, transform_indices = @transform_5, window_bounds = array<i64: 1, 128>}, {pipeline_mode = #tpu.pipeline_mode<synchronous>, transform_indices = @transform_6, window_bounds = array<i64: 1, 128>}, {transform_indices = @transform_7, window_bounds = array<i64: 16, 128>}]} {
    %c0 = arith.constant 0 : index
    %c0_0 = arith.constant 0 : index
    %0 = vector.load %arg1[%c0, %c0_0] : memref<16x128xf32, #tpu.memory_space<vmem>>, vector<16x128xf32>
    %1 = arith.truncf %0 : vector<16x128xf32> to vector<16x128xbf16>
    %c0_1 = arith.constant 0 : index
    %c0_2 = arith.constant 0 : index
    %2 = vector.load %arg2[%c0_1, %c0_2] : memref<128x128xbf16, #tpu.memory_space<vmem>>, vector<128x128xbf16>
    %cst = arith.constant dense<0.000000e+00> : vector<16x128xf32>
    %3 = tpu.matmul %1, %2, %cst {dimension_numbers = #tpu.dot_dimension_numbers<[1], [0], [0], [1], [0, 0, 1, 1], [], []>} : vector<16x128xbf16>, vector<128x128xbf16>, vector<16x128xf32> -> vector<16x128xf32>
    %c0_3 = arith.constant 0 : index
    %c0_4 = arith.constant 0 : index
    %4 = vector.load %arg3[%c0_3, %c0_4] : memref<1x128xf32, #tpu.memory_space<vmem>>, vector<1x128xf32>
    %5 = vector.broadcast %4 : vector<1x128xf32> to vector<16x128xf32>
    %6 = arith.addf %3, %5 : vector<16x128xf32>
    %cst_5 = arith.constant 0.000000e+00 : f32
    %7 = vector.broadcast %cst_5 : f32 to vector<16x128xf32>
    %8 = arith.maximumf %6, %7 : vector<16x128xf32>
    %9 = arith.truncf %8 : vector<16x128xf32> to vector<16x128xbf16>
    %c0_6 = arith.constant 0 : index
    %c0_7 = arith.constant 0 : index
    %10 = vector.load %arg4[%c0_6, %c0_7] : memref<128x128xbf16, #tpu.memory_space<vmem>>, vector<128x128xbf16>
    %cst_8 = arith.constant dense<0.000000e+00> : vector<16x128xf32>
    %11 = tpu.matmul %9, %10, %cst_8 {dimension_numbers = #tpu.dot_dimension_numbers<[1], [0], [0], [1], [0, 0, 1, 1], [], []>} : vector<16x128xbf16>, vector<128x128xbf16>, vector<16x128xf32> -> vector<16x128xf32>
    %c0_9 = arith.constant 0 : index
    %c0_10 = arith.constant 0 : index
    %12 = vector.load %arg5[%c0_9, %c0_10] : memref<1x128xf32, #tpu.memory_space<vmem>>, vector<1x128xf32>
    %13 = vector.broadcast %12 : vector<1x128xf32> to vector<16x128xf32>
    %14 = arith.addf %11, %13 : vector<16x128xf32>
    %15 = arith.addf %14, %0 : vector<16x128xf32>
    %cst_11 = arith.constant dense<0.000000e+00> : vector<16xf32>
    %16 = vector.multi_reduction <add>, %15, %cst_11 [1] : vector<16x128xf32> to vector<16xf32>
    %17 = vector.shape_cast %16 : vector<16xf32> to vector<16x1xf32>
    %cst_12 = arith.constant 3.125000e-02 : f32
    %18 = vector.broadcast %cst_12 : f32 to vector<16x1xf32>
    %19 = arith.mulf %17, %18 : vector<16x1xf32>
    %20 = arith.mulf %15, %15 : vector<16x128xf32>
    %cst_13 = arith.constant dense<0.000000e+00> : vector<16xf32>
    %21 = vector.multi_reduction <add>, %20, %cst_13 [1] : vector<16x128xf32> to vector<16xf32>
    %22 = vector.shape_cast %21 : vector<16xf32> to vector<16x1xf32>
    %cst_14 = arith.constant 3.125000e-02 : f32
    %23 = vector.broadcast %cst_14 : f32 to vector<16x1xf32>
    %24 = arith.mulf %22, %23 : vector<16x1xf32>
    %25 = arith.mulf %19, %19 : vector<16x1xf32>
    %26 = arith.subf %24, %25 : vector<16x1xf32>
    %27 = vector.broadcast %19 : vector<16x1xf32> to vector<16x128xf32>
    %28 = arith.subf %15, %27 : vector<16x128xf32>
    %cst_15 = arith.constant 9.99999974E-6 : f32
    %29 = vector.broadcast %cst_15 : f32 to vector<16x1xf32>
    %30 = arith.addf %26, %29 : vector<16x1xf32>
    %31 = math.rsqrt %30 : vector<16x1xf32>
    %32 = vector.broadcast %31 : vector<16x1xf32> to vector<16x128xf32>
    %33 = arith.mulf %28, %32 : vector<16x128xf32>
    %c0_16 = arith.constant 0 : index
    %c0_17 = arith.constant 0 : index
    %34 = vector.load %arg6[%c0_16, %c0_17] : memref<1x128xf32, #tpu.memory_space<vmem>>, vector<1x128xf32>
    %35 = vector.broadcast %34 : vector<1x128xf32> to vector<16x128xf32>
    %36 = arith.mulf %33, %35 : vector<16x128xf32>
    %c0_18 = arith.constant 0 : index
    %c0_19 = arith.constant 0 : index
    %37 = vector.load %arg7[%c0_18, %c0_19] : memref<1x128xf32, #tpu.memory_space<vmem>>, vector<1x128xf32>
    %38 = vector.broadcast %37 : vector<1x128xf32> to vector<16x128xf32>
    %39 = arith.addf %36, %38 : vector<16x128xf32>
    %c0_20 = arith.constant 0 : index
    %c0_21 = arith.constant 0 : index
    %40 = vector.load %arg8[%c0_20, %c0_21] : memref<16x128xf32, #tpu.memory_space<vmem>>, vector<16x128xf32>
    tpu.vector_store %arg8[%c0_20, %c0_21], %39 {strides = array<i32>} : memref<16x128xf32, #tpu.memory_space<vmem>>, vector<16x128xf32>,
    return
  }
  func.func @transform_0(%arg0: i32) -> (i32, i32) {
    %c0_i32 = arith.constant 0 : i32
    %c0_i32_0 = arith.constant 0 : i32
    return %arg0, %c0_i32 : i32, i32
  }
  func.func @transform_1(%arg0: i32) -> (i32, i32) {
    %c0_i32 = arith.constant 0 : i32
    %c0_i32_0 = arith.constant 0 : i32
    %c0_i32_1 = arith.constant 0 : i32
    return %c0_i32, %c0_i32_0 : i32, i32
  }
  func.func @transform_2(%arg0: i32) -> (i32, i32) {
    %c0_i32 = arith.constant 0 : i32
    %c0_i32_0 = arith.constant 0 : i32
    %c0_i32_1 = arith.constant 0 : i32
    return %c0_i32, %c0_i32_0 : i32, i32
  }
  func.func @transform_3(%arg0: i32) -> (i32, i32) {
    %c0_i32 = arith.constant 0 : i32
    %c0_i32_0 = arith.constant 0 : i32
    %c0_i32_1 = arith.constant 0 : i32
    return %c0_i32, %c0_i32_0 : i32, i32
  }
  func.func @transform_4(%arg0: i32) -> (i32, i32) {
    %c0_i32 = arith.constant 0 : i32
    %c0_i32_0 = arith.constant 0 : i32
    %c0_i32_1 = arith.constant 0 : i32
    return %c0_i32, %c0_i32_0 : i32, i32
  }
  func.func @transform_5(%arg0: i32) -> (i32, i32) {
    %c0_i32 = arith.constant 0 : i32
    %c0_i32_0 = arith.constant 0 : i32
    %c0_i32_1 = arith.constant 0 : i32
    return %c0_i32, %c0_i32_0 : i32, i32
  }
  func.func @transform_6(%arg0: i32) -> (i32, i32) {
    %c0_i32 = arith.constant 0 : i32
    %c0_i32_0 = arith.constant 0 : i32
    %c0_i32_1 = arith.constant 0 : i32
    return %c0_i32, %c0_i32_0 : i32, i32
  }
  func.func @transform_7(%arg0: i32) -> (i32, i32) {
    %c0_i32 = arith.constant 0 : i32
    %c0_i32_0 = arith.constant 0 : i32
    return %arg0, %c0_i32 : i32, i32
  }
}

module attributes {stable_mosaic.version = 11 : i64} {
  func.func @_attn_wo_ln_kernel(%arg0: i32, %arg1: memref<1x8x128xf32, #tpu.memory_space<vmem>>, %arg2: memref<1x1x8xf32, #tpu.memory_space<vmem>>, %arg3: memref<1x8x128xf32, #tpu.memory_space<vmem>>, %arg4: memref<32x128xbf16, #tpu.memory_space<vmem>>, %arg5: memref<1x128xf32, #tpu.memory_space<vmem>>, %arg6: memref<1x128xf32, #tpu.memory_space<vmem>>, %arg7: memref<1x128xf32, #tpu.memory_space<vmem>>, %arg8: memref<1x8x128xf32, #tpu.memory_space<vmem>>) attributes {dimension_semantics = [#tpu.dimension_semantics<parallel>], iteration_bounds = array<i64: 2>, scalar_prefetch = 0 : i64, scratch_operands = 0 : i64, tpu.core_type = #tpu.core_type<tc>, window_params = [{transform_indices = @transform_0, window_bounds = array<i64: 1, 8, 128>}, {transform_indices = @transform_1, window_bounds = array<i64: 1, 1, 8>}, {transform_indices = @transform_2, window_bounds = array<i64: 1, 8, 128>}, {pipeline_mode = #tpu.pipeline_mode<synchronous>, transform_indices = @transform_3, window_bounds = array<i64: 32, 128>}, {pipeline_mode = #tpu.pipeline_mode<synchronous>, transform_indices = @transform_4, window_bounds = array<i64: 1, 128>}, {pipeline_mode = #tpu.pipeline_mode<synchronous>, transform_indices = @transform_5, window_bounds = array<i64: 1, 128>}, {pipeline_mode = #tpu.pipeline_mode<synchronous>, transform_indices = @transform_6, window_bounds = array<i64: 1, 128>}, {transform_indices = @transform_7, window_bounds = array<i64: 1, 8, 128>}]} {
    %c0 = arith.constant 0 : index
    %c0_0 = arith.constant 0 : index
    %c0_1 = arith.constant 0 : index
    %0 = vector.load %arg1[%c0, %c0_0, %c0_1] : memref<1x8x128xf32, #tpu.memory_space<vmem>>, vector<1x8x128xf32>
    %1 = vector.shape_cast %0 : vector<1x8x128xf32> to vector<8x128xf32>
    %c0_2 = arith.constant 0 : index
    %c0_3 = arith.constant 0 : index
    %c0_4 = arith.constant 0 : index
    %2 = vector.load %arg2[%c0_2, %c0_3, %c0_4] : memref<1x1x8xf32, #tpu.memory_space<vmem>>, vector<1x1x8xf32>
    %3 = vector.shape_cast %2 : vector<1x1x8xf32> to vector<1x8xf32>
    %c0_5 = arith.constant 0 : index
    %c0_6 = arith.constant 0 : index
    %c0_7 = arith.constant 0 : index
    %4 = vector.load %arg3[%c0_5, %c0_6, %c0_7] : memref<1x8x128xf32, #tpu.memory_space<vmem>>, vector<1x8x128xf32>
    %5 = vector.shape_cast %4 : vector<1x8x128xf32> to vector<8x128xf32>
    %6 = tpu.iota {dimensions = array<i32: 0>} : vector<8x8xi32>
    %7 = tpu.iota {dimensions = array<i32: 1>} : vector<8x8xi32>
    %8 = arith.cmpi sgt, %7, %6 : vector<8x8xi32>
    %cst = arith.constant 0.000000e+00 : f32
    %9 = vector.broadcast %cst : f32 to vector<1x8xf32>
    %10 = arith.cmpf ogt, %3, %9 : vector<1x8xf32>
    %11 = vector.broadcast %10 : vector<1x8xi1> to vector<8x8xi1>
    %12 = arith.ori %8, %11 : vector<8x8xi1>
    %13 = vector.extract_strided_slice %1 {offsets = [0, 0], sizes = [8, 8], strides = [1, 1]} : vector<8x128xf32> to vector<8x8xf32>
    %cst_8 = arith.constant 0.353553385 : f32
    %14 = vector.broadcast %cst_8 : f32 to vector<8x8xf32>
    %15 = arith.mulf %13, %14 : vector<8x8xf32>
    %16 = vector.extract_strided_slice %1 {offsets = [0, 32], sizes = [8, 8], strides = [1, 1]} : vector<8x128xf32> to vector<8x8xf32>
    %17 = vector.extract_strided_slice %1 {offsets = [0, 64], sizes = [8, 8], strides = [1, 1]} : vector<8x128xf32> to vector<8x8xf32>
    %18 = arith.truncf %15 : vector<8x8xf32> to vector<8x8xbf16>
    %19 = arith.truncf %16 : vector<8x8xf32> to vector<8x8xbf16>
    %cst_9 = arith.constant dense<0.000000e+00> : vector<8x8xf32>
    %20 = tpu.matmul %18, %19, %cst_9 {dimension_numbers = #tpu.dot_dimension_numbers<[1], [1], [0], [0], [0, 0, 1, 0], [], []>} : vector<8x8xbf16>, vector<8x8xbf16>, vector<8x8xf32> -> vector<8x8xf32>
    %cst_10 = arith.constant -1.000000e+09 : f32
    %21 = vector.broadcast %cst_10 : f32 to vector<8x8xf32>
    %22 = arith.select %12, %21, %20 : vector<8x8xi1>, vector<8x8xf32>
    %cst_11 = arith.constant dense<0xFF800000> : vector<8xf32>
    %23 = vector.multi_reduction <maximumf>, %22, %cst_11 [1] : vector<8x8xf32> to vector<8xf32>
    %24 = vector.shape_cast %23 : vector<8xf32> to vector<8x1xf32>
    %25 = vector.broadcast %24 : vector<8x1xf32> to vector<8x8xf32>
    %26 = arith.subf %22, %25 : vector<8x8xf32>
    %27 = math.exp %26 : vector<8x8xf32>
    %cst_12 = arith.constant dense<0.000000e+00> : vector<8xf32>
    %28 = vector.multi_reduction <add>, %27, %cst_12 [1] : vector<8x8xf32> to vector<8xf32>
    %29 = vector.shape_cast %28 : vector<8xf32> to vector<8x1xf32>
    %30 = tpu.reciprocal %29 {approx = true} : vector<8x1xf32> -> vector<8x1xf32>
    %31 = vector.broadcast %30 : vector<8x1xf32> to vector<8x8xf32>
    %32 = arith.mulf %27, %31 : vector<8x8xf32>
    %33 = arith.truncf %32 : vector<8x8xf32> to vector<8x8xbf16>
    %34 = arith.truncf %17 : vector<8x8xf32> to vector<8x8xbf16>
    %cst_13 = arith.constant dense<0.000000e+00> : vector<8x8xf32>
    %35 = tpu.matmul %33, %34, %cst_13 {dimension_numbers = #tpu.dot_dimension_numbers<[1], [0], [0], [1], [0, 0, 1, 1], [], []>} : vector<8x8xbf16>, vector<8x8xbf16>, vector<8x8xf32> -> vector<8x8xf32>
    %36 = vector.extract_strided_slice %1 {offsets = [0, 8], sizes = [8, 8], strides = [1, 1]} : vector<8x128xf32> to vector<8x8xf32>
    %cst_14 = arith.constant 0.353553385 : f32
    %37 = vector.broadcast %cst_14 : f32 to vector<8x8xf32>
    %38 = arith.mulf %36, %37 : vector<8x8xf32>
    %39 = vector.extract_strided_slice %1 {offsets = [0, 40], sizes = [8, 8], strides = [1, 1]} : vector<8x128xf32> to vector<8x8xf32>
    %40 = vector.extract_strided_slice %1 {offsets = [0, 72], sizes = [8, 8], strides = [1, 1]} : vector<8x128xf32> to vector<8x8xf32>
    %41 = arith.truncf %38 : vector<8x8xf32> to vector<8x8xbf16>
    %42 = arith.truncf %39 : vector<8x8xf32> to vector<8x8xbf16>
    %cst_15 = arith.constant dense<0.000000e+00> : vector<8x8xf32>
    %43 = tpu.matmul %41, %42, %cst_15 {dimension_numbers = #tpu.dot_dimension_numbers<[1], [1], [0], [0], [0, 0, 1, 0], [], []>} : vector<8x8xbf16>, vector<8x8xbf16>, vector<8x8xf32> -> vector<8x8xf32>
    %cst_16 = arith.constant -1.000000e+09 : f32
    %44 = vector.broadcast %cst_16 : f32 to vector<8x8xf32>
    %45 = arith.select %12, %44, %43 : vector<8x8xi1>, vector<8x8xf32>
    %cst_17 = arith.constant dense<0xFF800000> : vector<8xf32>
    %46 = vector.multi_reduction <maximumf>, %45, %cst_17 [1] : vector<8x8xf32> to vector<8xf32>
    %47 = vector.shape_cast %46 : vector<8xf32> to vector<8x1xf32>
    %48 = vector.broadcast %47 : vector<8x1xf32> to vector<8x8xf32>
    %49 = arith.subf %45, %48 : vector<8x8xf32>
    %50 = math.exp %49 : vector<8x8xf32>
    %cst_18 = arith.constant dense<0.000000e+00> : vector<8xf32>
    %51 = vector.multi_reduction <add>, %50, %cst_18 [1] : vector<8x8xf32> to vector<8xf32>
    %52 = vector.shape_cast %51 : vector<8xf32> to vector<8x1xf32>
    %53 = tpu.reciprocal %52 {approx = true} : vector<8x1xf32> -> vector<8x1xf32>
    %54 = vector.broadcast %53 : vector<8x1xf32> to vector<8x8xf32>
    %55 = arith.mulf %50, %54 : vector<8x8xf32>
    %56 = arith.truncf %55 : vector<8x8xf32> to vector<8x8xbf16>
    %57 = arith.truncf %40 : vector<8x8xf32> to vector<8x8xbf16>
    %cst_19 = arith.constant dense<0.000000e+00> : vector<8x8xf32>
    %58 = tpu.matmul %56, %57, %cst_19 {dimension_numbers = #tpu.dot_dimension_numbers<[1], [0], [0], [1], [0, 0, 1, 1], [], []>} : vector<8x8xbf16>, vector<8x8xbf16>, vector<8x8xf32> -> vector<8x8xf32>
    %59 = vector.extract_strided_slice %1 {offsets = [0, 16], sizes = [8, 8], strides = [1, 1]} : vector<8x128xf32> to vector<8x8xf32>
    %cst_20 = arith.constant 0.353553385 : f32
    %60 = vector.broadcast %cst_20 : f32 to vector<8x8xf32>
    %61 = arith.mulf %59, %60 : vector<8x8xf32>
    %62 = vector.extract_strided_slice %1 {offsets = [0, 48], sizes = [8, 8], strides = [1, 1]} : vector<8x128xf32> to vector<8x8xf32>
    %63 = vector.extract_strided_slice %1 {offsets = [0, 80], sizes = [8, 8], strides = [1, 1]} : vector<8x128xf32> to vector<8x8xf32>
    %64 = arith.truncf %61 : vector<8x8xf32> to vector<8x8xbf16>
    %65 = arith.truncf %62 : vector<8x8xf32> to vector<8x8xbf16>
    %cst_21 = arith.constant dense<0.000000e+00> : vector<8x8xf32>
    %66 = tpu.matmul %64, %65, %cst_21 {dimension_numbers = #tpu.dot_dimension_numbers<[1], [1], [0], [0], [0, 0, 1, 0], [], []>} : vector<8x8xbf16>, vector<8x8xbf16>, vector<8x8xf32> -> vector<8x8xf32>
    %cst_22 = arith.constant -1.000000e+09 : f32
    %67 = vector.broadcast %cst_22 : f32 to vector<8x8xf32>
    %68 = arith.select %12, %67, %66 : vector<8x8xi1>, vector<8x8xf32>
    %cst_23 = arith.constant dense<0xFF800000> : vector<8xf32>
    %69 = vector.multi_reduction <maximumf>, %68, %cst_23 [1] : vector<8x8xf32> to vector<8xf32>
    %70 = vector.shape_cast %69 : vector<8xf32> to vector<8x1xf32>
    %71 = vector.broadcast %70 : vector<8x1xf32> to vector<8x8xf32>
    %72 = arith.subf %68, %71 : vector<8x8xf32>
    %73 = math.exp %72 : vector<8x8xf32>
    %cst_24 = arith.constant dense<0.000000e+00> : vector<8xf32>
    %74 = vector.multi_reduction <add>, %73, %cst_24 [1] : vector<8x8xf32> to vector<8xf32>
    %75 = vector.shape_cast %74 : vector<8xf32> to vector<8x1xf32>
    %76 = tpu.reciprocal %75 {approx = true} : vector<8x1xf32> -> vector<8x1xf32>
    %77 = vector.broadcast %76 : vector<8x1xf32> to vector<8x8xf32>
    %78 = arith.mulf %73, %77 : vector<8x8xf32>
    %79 = arith.truncf %78 : vector<8x8xf32> to vector<8x8xbf16>
    %80 = arith.truncf %63 : vector<8x8xf32> to vector<8x8xbf16>
    %cst_25 = arith.constant dense<0.000000e+00> : vector<8x8xf32>
    %81 = tpu.matmul %79, %80, %cst_25 {dimension_numbers = #tpu.dot_dimension_numbers<[1], [0], [0], [1], [0, 0, 1, 1], [], []>} : vector<8x8xbf16>, vector<8x8xbf16>, vector<8x8xf32> -> vector<8x8xf32>
    %82 = vector.extract_strided_slice %1 {offsets = [0, 24], sizes = [8, 8], strides = [1, 1]} : vector<8x128xf32> to vector<8x8xf32>
    %cst_26 = arith.constant 0.353553385 : f32
    %83 = vector.broadcast %cst_26 : f32 to vector<8x8xf32>
    %84 = arith.mulf %82, %83 : vector<8x8xf32>
    %85 = vector.extract_strided_slice %1 {offsets = [0, 56], sizes = [8, 8], strides = [1, 1]} : vector<8x128xf32> to vector<8x8xf32>
    %86 = vector.extract_strided_slice %1 {offsets = [0, 88], sizes = [8, 8], strides = [1, 1]} : vector<8x128xf32> to vector<8x8xf32>
    %87 = arith.truncf %84 : vector<8x8xf32> to vector<8x8xbf16>
    %88 = arith.truncf %85 : vector<8x8xf32> to vector<8x8xbf16>
    %cst_27 = arith.constant dense<0.000000e+00> : vector<8x8xf32>
    %89 = tpu.matmul %87, %88, %cst_27 {dimension_numbers = #tpu.dot_dimension_numbers<[1], [1], [0], [0], [0, 0, 1, 0], [], []>} : vector<8x8xbf16>, vector<8x8xbf16>, vector<8x8xf32> -> vector<8x8xf32>
    %cst_28 = arith.constant -1.000000e+09 : f32
    %90 = vector.broadcast %cst_28 : f32 to vector<8x8xf32>
    %91 = arith.select %12, %90, %89 : vector<8x8xi1>, vector<8x8xf32>
    %cst_29 = arith.constant dense<0xFF800000> : vector<8xf32>
    %92 = vector.multi_reduction <maximumf>, %91, %cst_29 [1] : vector<8x8xf32> to vector<8xf32>
    %93 = vector.shape_cast %92 : vector<8xf32> to vector<8x1xf32>
    %94 = vector.broadcast %93 : vector<8x1xf32> to vector<8x8xf32>
    %95 = arith.subf %91, %94 : vector<8x8xf32>
    %96 = math.exp %95 : vector<8x8xf32>
    %cst_30 = arith.constant dense<0.000000e+00> : vector<8xf32>
    %97 = vector.multi_reduction <add>, %96, %cst_30 [1] : vector<8x8xf32> to vector<8xf32>
    %98 = vector.shape_cast %97 : vector<8xf32> to vector<8x1xf32>
    %99 = tpu.reciprocal %98 {approx = true} : vector<8x1xf32> -> vector<8x1xf32>
    %100 = vector.broadcast %99 : vector<8x1xf32> to vector<8x8xf32>
    %101 = arith.mulf %96, %100 : vector<8x8xf32>
    %102 = arith.truncf %101 : vector<8x8xf32> to vector<8x8xbf16>
    %103 = arith.truncf %86 : vector<8x8xf32> to vector<8x8xbf16>
    %cst_31 = arith.constant dense<0.000000e+00> : vector<8x8xf32>
    %104 = tpu.matmul %102, %103, %cst_31 {dimension_numbers = #tpu.dot_dimension_numbers<[1], [0], [0], [1], [0, 0, 1, 1], [], []>} : vector<8x8xbf16>, vector<8x8xbf16>, vector<8x8xf32> -> vector<8x8xf32>
    %105 = tpu.concatenate %35, %58, %81, %104 in 1 : vector<8x8xf32>, vector<8x8xf32>, vector<8x8xf32>, vector<8x8xf32> -> vector<8x32xf32>
    %106 = arith.truncf %105 : vector<8x32xf32> to vector<8x32xbf16>
    %c0_32 = arith.constant 0 : index
    %c0_33 = arith.constant 0 : index
    %107 = vector.load %arg4[%c0_32, %c0_33] : memref<32x128xbf16, #tpu.memory_space<vmem>>, vector<32x128xbf16>
    %cst_34 = arith.constant dense<0.000000e+00> : vector<8x128xf32>
    %108 = tpu.matmul %106, %107, %cst_34 {dimension_numbers = #tpu.dot_dimension_numbers<[1], [0], [0], [1], [0, 0, 1, 1], [], []>} : vector<8x32xbf16>, vector<32x128xbf16>, vector<8x128xf32> -> vector<8x128xf32>
    %c0_35 = arith.constant 0 : index
    %c0_36 = arith.constant 0 : index
    %109 = vector.load %arg5[%c0_35, %c0_36] : memref<1x128xf32, #tpu.memory_space<vmem>>, vector<1x128xf32>
    %110 = vector.broadcast %109 : vector<1x128xf32> to vector<8x128xf32>
    %111 = arith.addf %108, %110 : vector<8x128xf32>
    %112 = arith.addf %111, %5 : vector<8x128xf32>
    %cst_37 = arith.constant dense<0.000000e+00> : vector<8xf32>
    %113 = vector.multi_reduction <add>, %112, %cst_37 [1] : vector<8x128xf32> to vector<8xf32>
    %114 = vector.shape_cast %113 : vector<8xf32> to vector<8x1xf32>
    %cst_38 = arith.constant 3.125000e-02 : f32
    %115 = vector.broadcast %cst_38 : f32 to vector<8x1xf32>
    %116 = arith.mulf %114, %115 : vector<8x1xf32>
    %117 = arith.mulf %112, %112 : vector<8x128xf32>
    %cst_39 = arith.constant dense<0.000000e+00> : vector<8xf32>
    %118 = vector.multi_reduction <add>, %117, %cst_39 [1] : vector<8x128xf32> to vector<8xf32>
    %119 = vector.shape_cast %118 : vector<8xf32> to vector<8x1xf32>
    %cst_40 = arith.constant 3.125000e-02 : f32
    %120 = vector.broadcast %cst_40 : f32 to vector<8x1xf32>
    %121 = arith.mulf %119, %120 : vector<8x1xf32>
    %122 = arith.mulf %116, %116 : vector<8x1xf32>
    %123 = arith.subf %121, %122 : vector<8x1xf32>
    %124 = vector.broadcast %116 : vector<8x1xf32> to vector<8x128xf32>
    %125 = arith.subf %112, %124 : vector<8x128xf32>
    %cst_41 = arith.constant 9.99999974E-6 : f32
    %126 = vector.broadcast %cst_41 : f32 to vector<8x1xf32>
    %127 = arith.addf %123, %126 : vector<8x1xf32>
    %128 = math.rsqrt %127 : vector<8x1xf32>
    %129 = vector.broadcast %128 : vector<8x1xf32> to vector<8x128xf32>
    %130 = arith.mulf %125, %129 : vector<8x128xf32>
    %c0_42 = arith.constant 0 : index
    %c0_43 = arith.constant 0 : index
    %131 = vector.load %arg6[%c0_42, %c0_43] : memref<1x128xf32, #tpu.memory_space<vmem>>, vector<1x128xf32>
    %132 = vector.broadcast %131 : vector<1x128xf32> to vector<8x128xf32>
    %133 = arith.mulf %130, %132 : vector<8x128xf32>
    %c0_44 = arith.constant 0 : index
    %c0_45 = arith.constant 0 : index
    %134 = vector.load %arg7[%c0_44, %c0_45] : memref<1x128xf32, #tpu.memory_space<vmem>>, vector<1x128xf32>
    %135 = vector.broadcast %134 : vector<1x128xf32> to vector<8x128xf32>
    %136 = arith.addf %133, %135 : vector<8x128xf32>
    %c0_46 = arith.constant 0 : index
    %c0_47 = arith.constant 0 : index
    %c0_48 = arith.constant 0 : index
    %137 = vector.load %arg8[%c0_46, %c0_47, %c0_48] : memref<1x8x128xf32, #tpu.memory_space<vmem>>, vector<1x8x128xf32>
    %138 = vector.shape_cast %137 : vector<1x8x128xf32> to vector<8x128xf32>
    %139 = vector.shape_cast %136 : vector<8x128xf32> to vector<1x8x128xf32>
    tpu.vector_store %arg8[%c0_46, %c0_47, %c0_48], %139 {strides = array<i32>} : memref<1x8x128xf32, #tpu.memory_space<vmem>>, vector<1x8x128xf32>,
    return
  }
  func.func @transform_0(%arg0: i32) -> (i32, i32, i32) {
    %c0_i32 = arith.constant 0 : i32
    %c0_i32_0 = arith.constant 0 : i32
    %c0_i32_1 = arith.constant 0 : i32
    return %arg0, %c0_i32, %c0_i32_0 : i32, i32, i32
  }
  func.func @transform_1(%arg0: i32) -> (i32, i32, i32) {
    %c0_i32 = arith.constant 0 : i32
    %c0_i32_0 = arith.constant 0 : i32
    %c0_i32_1 = arith.constant 0 : i32
    return %arg0, %c0_i32, %c0_i32_0 : i32, i32, i32
  }
  func.func @transform_2(%arg0: i32) -> (i32, i32, i32) {
    %c0_i32 = arith.constant 0 : i32
    %c0_i32_0 = arith.constant 0 : i32
    %c0_i32_1 = arith.constant 0 : i32
    return %arg0, %c0_i32, %c0_i32_0 : i32, i32, i32
  }
  func.func @transform_3(%arg0: i32) -> (i32, i32) {
    %c0_i32 = arith.constant 0 : i32
    %c0_i32_0 = arith.constant 0 : i32
    %c0_i32_1 = arith.constant 0 : i32
    return %c0_i32, %c0_i32_0 : i32, i32
  }
  func.func @transform_4(%arg0: i32) -> (i32, i32) {
    %c0_i32 = arith.constant 0 : i32
    %c0_i32_0 = arith.constant 0 : i32
    %c0_i32_1 = arith.constant 0 : i32
    return %c0_i32, %c0_i32_0 : i32, i32
  }
  func.func @transform_5(%arg0: i32) -> (i32, i32) {
    %c0_i32 = arith.constant 0 : i32
    %c0_i32_0 = arith.constant 0 : i32
    %c0_i32_1 = arith.constant 0 : i32
    return %c0_i32, %c0_i32_0 : i32, i32
  }
  func.func @transform_6(%arg0: i32) -> (i32, i32) {
    %c0_i32 = arith.constant 0 : i32
    %c0_i32_0 = arith.constant 0 : i32
    %c0_i32_1 = arith.constant 0 : i32
    return %c0_i32, %c0_i32_0 : i32, i32
  }
  func.func @transform_7(%arg0: i32) -> (i32, i32, i32) {
    %c0_i32 = arith.constant 0 : i32
    %c0_i32_0 = arith.constant 0 : i32
    %c0_i32_1 = arith.constant 0 : i32
    return %arg0, %c0_i32, %c0_i32_0 : i32, i32, i32
  }
}

module attributes {stable_mosaic.version = 11 : i64} {
  func.func @_matmul_single_kernel(%arg0: i32, %arg1: i32, %arg2: memref<16x128xf32, #tpu.memory_space<vmem>>, %arg3: memref<128x128xbf16, #tpu.memory_space<vmem>>, %arg4: memref<1x128xf32, #tpu.memory_space<vmem>>, %arg5: memref<16x128xf32, #tpu.memory_space<vmem>>) attributes {dimension_semantics = [#tpu.dimension_semantics<parallel>, #tpu.dimension_semantics<parallel>], iteration_bounds = array<i64: 1, 1>, scalar_prefetch = 0 : i64, scratch_operands = 0 : i64, tpu.core_type = #tpu.core_type<tc>, window_params = [{transform_indices = @transform_0, window_bounds = array<i64: 16, 128>}, {transform_indices = @transform_1, window_bounds = array<i64: 128, 128>}, {transform_indices = @transform_2, window_bounds = array<i64: 1, 128>}, {transform_indices = @transform_3, window_bounds = array<i64: 16, 128>}]} {
    %c0 = arith.constant 0 : index
    %c0_0 = arith.constant 0 : index
    %0 = vector.load %arg2[%c0, %c0_0] : memref<16x128xf32, #tpu.memory_space<vmem>>, vector<16x128xf32>
    %1 = arith.truncf %0 : vector<16x128xf32> to vector<16x128xbf16>
    %c0_1 = arith.constant 0 : index
    %c0_2 = arith.constant 0 : index
    %2 = vector.load %arg3[%c0_1, %c0_2] : memref<128x128xbf16, #tpu.memory_space<vmem>>, vector<128x128xbf16>
    %cst = arith.constant dense<0.000000e+00> : vector<16x128xf32>
    %3 = tpu.matmul %1, %2, %cst {dimension_numbers = #tpu.dot_dimension_numbers<[1], [0], [0], [1], [0, 0, 1, 1], [], []>} : vector<16x128xbf16>, vector<128x128xbf16>, vector<16x128xf32> -> vector<16x128xf32>
    %c0_3 = arith.constant 0 : index
    %c0_4 = arith.constant 0 : index
    %4 = vector.load %arg4[%c0_3, %c0_4] : memref<1x128xf32, #tpu.memory_space<vmem>>, vector<1x128xf32>
    %5 = vector.broadcast %4 : vector<1x128xf32> to vector<16x128xf32>
    %6 = arith.addf %3, %5 : vector<16x128xf32>
    %c0_5 = arith.constant 0 : index
    %c0_6 = arith.constant 0 : index
    %7 = vector.load %arg5[%c0_5, %c0_6] : memref<16x128xf32, #tpu.memory_space<vmem>>, vector<16x128xf32>
    tpu.vector_store %arg5[%c0_5, %c0_6], %6 {strides = array<i32>} : memref<16x128xf32, #tpu.memory_space<vmem>>, vector<16x128xf32>,
    return
  }
  func.func @transform_0(%arg0: i32, %arg1: i32) -> (i32, i32) {
    %c0_i32 = arith.constant 0 : i32
    %c0_i32_0 = arith.constant 0 : i32
    return %arg0, %c0_i32 : i32, i32
  }
  func.func @transform_1(%arg0: i32, %arg1: i32) -> (i32, i32) {
    %c0_i32 = arith.constant 0 : i32
    %c0_i32_0 = arith.constant 0 : i32
    return %c0_i32, %arg1 : i32, i32
  }
  func.func @transform_2(%arg0: i32, %arg1: i32) -> (i32, i32) {
    %c0_i32 = arith.constant 0 : i32
    %c0_i32_0 = arith.constant 0 : i32
    return %c0_i32, %arg1 : i32, i32
  }
  func.func @transform_3(%arg0: i32, %arg1: i32) -> (i32, i32) {
    %c0_i32 = arith.constant 0 : i32
    return %arg0, %arg1 : i32, i32
  }
}

</mosaic_0001>

<llo_original>
// kernel: gamma_gpt_forward.9
$region0: #{gamma_gpt_forward.9}
  #allocation0 [shape = 'u32[]', space=smem, size = 0x4, offset = 0x4, fixed_abs, tag = 'smem constant byte address 0x4 - core index']
  #allocation1 [shape = 'u32[144,128]{1,0:T(1,128)}', space=vmem, size = 0x12000, scoped, tag = 'internal scratch']
  %s0 = inlined_call_operand.vmem [shape: f32[16,128], index: 0, kind: input, shape index: {}]
  %s1 = inlined_call_operand.vmem [shape: bf16[128,128], index: 1, kind: input, shape index: {}]
  %s2 = inlined_call_operand.vmem [shape: f32[1,128], index: 2, kind: input, shape index: {}]
  %s3 = inlined_call_operand.vmem [shape: bf16[128,128], index: 3, kind: input, shape index: {}]
  %s4 = inlined_call_operand.vmem [shape: f32[1,128], index: 4, kind: input, shape index: {}]
  %s5 = inlined_call_operand.vmem [shape: f32[1,128], index: 5, kind: input, shape index: {}]
  %s6 = inlined_call_operand.vmem [shape: f32[1,128], index: 6, kind: input, shape index: {}]
  %s7 = inlined_call_operand.vmem [shape: f32[16,128], index: 7, kind: output, shape index: {}]
  %s8 = sld [smem:[#allocation0]]
  $region38: #{gamma_gpt_forward.9} parent=0
    _
  %s10 = ssub.s32 1, %s8
  %s11 = scalar_select 0, %s10, %s8
  // Predicated region
  $region2: #{gamma_gpt_forward.9} parent=0 // pred_check
    _
  $region3: #{gamma_gpt_forward.9} parent=0 // pred_check_branch
    %13 = sbr.rel (0) target = $region5
  $region4: #{gamma_gpt_forward.9} parent=0 // pred_region
    _
  $region5: #{gamma_gpt_forward.9} parent=0 // pred_fallthru
    _
  // Predicated region
  $region6: #{gamma_gpt_forward.9} parent=0 // pred_check
    _
  $region7: #{gamma_gpt_forward.9} parent=0 // pred_check_branch
    %15 = sbr.rel (0) target = $region9
  $region8: #{gamma_gpt_forward.9} parent=0 // pred_region
    _
  $region9: #{gamma_gpt_forward.9} parent=0 // pred_fallthru
    _
  // Predicated region
  $region10: #{gamma_gpt_forward.9} parent=0 // pred_check
    _
  $region11: #{gamma_gpt_forward.9} parent=0 // pred_check_branch
    %17 = sbr.rel (0) target = $region13
  $region12: #{gamma_gpt_forward.9} parent=0 // pred_region
    _
  $region13: #{gamma_gpt_forward.9} parent=0 // pred_fallthru
    _
  // Predicated region
  $region14: #{gamma_gpt_forward.9} parent=0 // pred_check
    _
  $region15: #{gamma_gpt_forward.9} parent=0 // pred_check_branch
    %19 = sbr.rel (0) target = $region17
  $region16: #{gamma_gpt_forward.9} parent=0 // pred_region
    _
  $region17: #{gamma_gpt_forward.9} parent=0 // pred_fallthru
    _
  // Predicated region
  $region18: #{gamma_gpt_forward.9} parent=0 // pred_check
    _
  $region19: #{gamma_gpt_forward.9} parent=0 // pred_check_branch
    %21 = sbr.rel (0) target = $region21
  $region20: #{gamma_gpt_forward.9} parent=0 // pred_region
    _
  $region21: #{gamma_gpt_forward.9} parent=0 // pred_fallthru
    _
  // Predicated region
  $region22: #{gamma_gpt_forward.9} parent=0 // pred_check
    _
  $region23: #{gamma_gpt_forward.9} parent=0 // pred_check_branch
    %23 = sbr.rel (0) target = $region25
  $region24: #{gamma_gpt_forward.9} parent=0 // pred_region
    _
  $region25: #{gamma_gpt_forward.9} parent=0 // pred_fallthru
    _
  // Predicated region
  $region26: #{gamma_gpt_forward.9} parent=0 // pred_check
    _
  $region27: #{gamma_gpt_forward.9} parent=0 // pred_check_branch
    %25 = sbr.rel (0) target = $region29
  $region28: #{gamma_gpt_forward.9} parent=0 // pred_region
    _
  $region29: #{gamma_gpt_forward.9} parent=0 // pred_fallthru
    _
  %v27 = vld [vmem:[%s0] sm:$0xff]
  %v28 = vld [vmem:[%s0 + $0x8] sm:$0xff]
  %v29 = vpack.c.bf16 %v28, %v27
  %v30 = vld [vmem:[%s1] sm:$0xf]
  %v31 = vld [vmem:[%s1 + $0x4] sm:$0xf]
  %v32 = vld [vmem:[%s1 + $0x8] sm:$0xf]
  %v33 = vld [vmem:[%s1 + $0xc] sm:$0xf]
  %v34 = vld [vmem:[%s1 + $0x10] sm:$0xf]
  %v35 = vld [vmem:[%s1 + $0x14] sm:$0xf]
  %v36 = vld [vmem:[%s1 + $0x18] sm:$0xf]
  %v37 = vld [vmem:[%s1 + $0x1c] sm:$0xf]
  %v38 = vld [vmem:[%s1 + $0x20] sm:$0xf]
  %v39 = vld [vmem:[%s1 + $0x24] sm:$0xf]
  %v40 = vld [vmem:[%s1 + $0x28] sm:$0xf]
  %v41 = vld [vmem:[%s1 + $0x2c] sm:$0xf]
  %v42 = vld [vmem:[%s1 + $0x30] sm:$0xf]
  %v43 = vld [vmem:[%s1 + $0x34] sm:$0xf]
  %v44 = vld [vmem:[%s1 + $0x38] sm:$0xf]
  %v45 = vld [vmem:[%s1 + $0x3c] sm:$0xf]
  %v46 = vld [vmem:[%s2] sm:$0x1]
  %v48 = vlaneseq
  %v49 = vshrl.u32 %v48, 7
  %v50 = vsub.s32 0, %v49
  %v51 = vrot.slane %v46, %v50
  %v69 = vunpack.c.l.b16 %v30
  %v70 = vunpack.c.l.b16 %v31
  %v71 = vunpack.c.l.b16 %v32
  %v72 = vunpack.c.l.b16 %v33
  %v73 = vunpack.c.l.b16 %v34
  %v74 = vunpack.c.l.b16 %v35
  %v75 = vunpack.c.l.b16 %v36
  %v76 = vunpack.c.l.b16 %v37
  %v77 = vunpack.c.l.b16 %v38
  %v78 = vunpack.c.l.b16 %v39
  %v79 = vunpack.c.l.b16 %v40
  %v80 = vunpack.c.l.b16 %v41
  %v81 = vunpack.c.l.b16 %v42
  %v82 = vunpack.c.l.b16 %v43
  %v83 = vunpack.c.l.b16 %v44
  %v84 = vunpack.c.l.b16 %v45
  %v85 = vpack.c.b16 %v70, %v69
  %v86 = vpack.c.b16 %v72, %v71
  %v87 = vpack.c.b16 %v74, %v73
  %v88 = vpack.c.b16 %v76, %v75
  %v89 = vpack.c.b16 %v78, %v77
  %v90 = vpack.c.b16 %v80, %v79
  %v91 = vpack.c.b16 %v82, %v81
  %v92 = vpack.c.b16 %v84, %v83
  %101 = vmatprep.subr.bf16.mxu0 0
  %102 = vmatpush1.bf16.msra.mxu0 %v85
  %103 = vmatprep.subr.bf16.mxu0 0
  %104 = vmatpush1.bf16.msra.mxu0 %v86
  %105 = vmatprep.subr.bf16.mxu0 0
  %106 = vmatpush1.bf16.msra.mxu0 %v87
  %107 = vmatprep.subr.bf16.mxu0 0
  %108 = vmatpush1.bf16.msra.mxu0 %v88
  %109 = vmatprep.subr.bf16.mxu0 0
  %110 = vmatpush1.bf16.msra.mxu0 %v89
  %111 = vmatprep.subr.bf16.mxu0 0
  %112 = vmatpush1.bf16.msra.mxu0 %v90
  %113 = vmatprep.subr.bf16.mxu0 0
  %114 = vmatpush1.bf16.msra.mxu0 %v91
  %115 = vmatprep.subr.bf16.mxu0 0
  %116 = vmatpush1.bf16.msra.mxu0 %v92
  %117 = vmatprep.subr.bf16.mxu0 0
  %118 = vmatpush1.bf16.msra.mxu0 0
  %119 = vmatprep.subr.bf16.mxu0 0
  %120 = vmatpush1.bf16.msra.mxu0 0
  %121 = vmatprep.subr.bf16.mxu0 0
  %122 = vmatpush1.bf16.msra.mxu0 0
  %123 = vmatprep.subr.bf16.mxu0 0
  %124 = vmatpush1.bf16.msra.mxu0 0
  %125 = vmatprep.subr.bf16.mxu0 0
  %126 = vmatpush1.bf16.msra.mxu0 0
  %127 = vmatprep.subr.bf16.mxu0 0
  %128 = vmatpush1.bf16.msra.mxu0 0
  %129 = vmatprep.subr.bf16.mxu0 0
  %130 = vmatpush1.bf16.msra.mxu0 0
  %131 = vmatprep.subr.bf16.mxu0 0
  %132 = vmatpush1.bf16.msra.mxu0 0
  %133 = vmatprep.mubr.bf16.mxu0 0
  %134 = vmatmul.mubr.bf16.gmra.mrb[0].mxu0 %v29
  %v135 = vpop.f32.mrb[0].mxu0
  %v136 = vadd.f32 %v51, %v135
  %v137 = vpop.f32.mrb[0].mxu0
  %v138 = vpop.f32.mrb[0].mxu0
  %v139 = vadd.f32 %v51, %v138
  %v140 = vpop.f32.mrb[0].mxu0
  %141 = vdwg.mxu0
  %v142 = vmax.f32 %v136, 0.0
  %v143 = vmax.f32 %v139, 0.0
  %v144 = vpack.c.bf16 %v143, %v142
  %v145 = vld [vmem:[%s3] sm:$0xf]
  %v146 = vld [vmem:[%s3 + $0x4] sm:$0xf]
  %v147 = vld [vmem:[%s3 + $0x8] sm:$0xf]
  %v148 = vld [vmem:[%s3 + $0xc] sm:$0xf]
  %v149 = vld [vmem:[%s3 + $0x10] sm:$0xf]
  %v150 = vld [vmem:[%s3 + $0x14] sm:$0xf]
  %v151 = vld [vmem:[%s3 + $0x18] sm:$0xf]
  %v152 = vld [vmem:[%s3 + $0x1c] sm:$0xf]
  %v153 = vld [vmem:[%s3 + $0x20] sm:$0xf]
  %v154 = vld [vmem:[%s3 + $0x24] sm:$0xf]
  %v155 = vld [vmem:[%s3 + $0x28] sm:$0xf]
  %v156 = vld [vmem:[%s3 + $0x2c] sm:$0xf]
  %v157 = vld [vmem:[%s3 + $0x30] sm:$0xf]
  %v158 = vld [vmem:[%s3 + $0x34] sm:$0xf]
  %v159 = vld [vmem:[%s3 + $0x38] sm:$0xf]
  %v160 = vld [vmem:[%s3 + $0x3c] sm:$0xf]
  %v161 = vld [vmem:[%s4] sm:$0x1]
  %v163 = vlaneseq
  %v164 = vshrl.u32 %v163, 7
  %v165 = vsub.s32 0, %v164
  %v166 = vrot.slane %v161, %v165
  %v184 = vunpack.c.l.b16 %v145
  %v185 = vunpack.c.l.b16 %v146
  %v186 = vunpack.c.l.b16 %v147
  %v187 = vunpack.c.l.b16 %v148
  %v188 = vunpack.c.l.b16 %v149
  %v189 = vunpack.c.l.b16 %v150
  %v190 = vunpack.c.l.b16 %v151
  %v191 = vunpack.c.l.b16 %v152
  %v192 = vunpack.c.l.b16 %v153
  %v193 = vunpack.c.l.b16 %v154
  %v194 = vunpack.c.l.b16 %v155
  %v195 = vunpack.c.l.b16 %v156
  %v196 = vunpack.c.l.b16 %v157
  %v197 = vunpack.c.l.b16 %v158
  %v198 = vunpack.c.l.b16 %v159
  %v199 = vunpack.c.l.b16 %v160
  %v200 = vpack.c.b16 %v185, %v184
  %v201 = vpack.c.b16 %v187, %v186
  %v202 = vpack.c.b16 %v189, %v188
  %v203 = vpack.c.b16 %v191, %v190
  %v204 = vpack.c.b16 %v193, %v192
  %v205 = vpack.c.b16 %v195, %v194
  %v206 = vpack.c.b16 %v197, %v196
  %v207 = vpack.c.b16 %v199, %v198
  %216 = vmatprep.subr.bf16.mxu0 0
  %217 = vmatpush1.bf16.msra.mxu0 %v200
  %218 = vmatprep.subr.bf16.mxu0 0
  %219 = vmatpush1.bf16.msra.mxu0 %v201
  %220 = vmatprep.subr.bf16.mxu0 0
  %221 = vmatpush1.bf16.msra.mxu0 %v202
  %222 = vmatprep.subr.bf16.mxu0 0
  %223 = vmatpush1.bf16.msra.mxu0 %v203
  %224 = vmatprep.subr.bf16.mxu0 0
  %225 = vmatpush1.bf16.msra.mxu0 %v204
  %226 = vmatprep.subr.bf16.mxu0 0
  %227 = vmatpush1.bf16.msra.mxu0 %v205
  %228 = vmatprep.subr.bf16.mxu0 0
  %229 = vmatpush1.bf16.msra.mxu0 %v206
  %230 = vmatprep.subr.bf16.mxu0 0
  %231 = vmatpush1.bf16.msra.mxu0 %v207
  %232 = vmatprep.subr.bf16.mxu0 0
  %233 = vmatpush1.bf16.msra.mxu0 0
  %234 = vmatprep.subr.bf16.mxu0 0
  %235 = vmatpush1.bf16.msra.mxu0 0
  %236 = vmatprep.subr.bf16.mxu0 0
  %237 = vmatpush1.bf16.msra.mxu0 0
  %238 = vmatprep.subr.bf16.mxu0 0
  %239 = vmatpush1.bf16.msra.mxu0 0
  %240 = vmatprep.subr.bf16.mxu0 0
  %241 = vmatpush1.bf16.msra.mxu0 0
  %242 = vmatprep.subr.bf16.mxu0 0
  %243 = vmatpush1.bf16.msra.mxu0 0
  %244 = vmatprep.subr.bf16.mxu0 0
  %245 = vmatpush1.bf16.msra.mxu0 0
  %246 = vmatprep.subr.bf16.mxu0 0
  %247 = vmatpush1.bf16.msra.mxu0 0
  %248 = vmatprep.mubr.bf16.mxu0 0
  %249 = vmatmul.mubr.bf16.gmra.mrb[0].mxu0 %v144
  %v250 = vpop.f32.mrb[0].mxu0
  %v251 = vadd.f32 %v166, %v250
  %v252 = vpop.f32.mrb[0].mxu0
  %v253 = vpop.f32.mrb[0].mxu0
  %v254 = vadd.f32 %v166, %v253
  %v255 = vpop.f32.mrb[0].mxu0
  %256 = vdwg.mxu0
  %v257 = vadd.f32 %v251, %v27
  %v258 = vadd.f32 %v254, %v28
  %259 = vadd.xlane.f32.xlu0 %v257
  %v260 = vpop.xlane.xlu0 %259
  %261 = vadd.xlane.f32.xlu0 %v258
  %v262 = vpop.xlane.xlu0 %261
  %v263 = vmul.f32 %v260, 0.03125
  %v264 = vmul.f32 %v262, 0.03125
  %v265 = vmul.f32 %v257, %v257
  %v266 = vmul.f32 %v258, %v258
  %267 = vadd.xlane.f32.xlu0 %v265
  %v268 = vpop.xlane.xlu0 %267
  %269 = vadd.xlane.f32.xlu0 %v266
  %v270 = vpop.xlane.xlu0 %269
  %v271 = vmul.f32 %v268, 0.03125
  %v272 = vmul.f32 %v270, 0.03125
  %v273 = vmul.f32 %v263, %v263
  %v274 = vmul.f32 %v264, %v264
  %v275 = vsub.f32 %v271, %v273
  %v276 = vsub.f32 %v272, %v274
  %v277 = vsub.f32 %v257, %v263
  %v278 = vsub.f32 %v258, %v264
  %v279 = vadd.f32 %v275, 1e-05
  %v280 = vadd.f32 %v276, 1e-05
  %v281 = vrsqrt.pop %v279
  %v282 = vrsqrt.pop %v280
  %v283 = vmul.f32 %v277, %v281
  %v284 = vmul.f32 %v278, %v282
  %v285 = vld [vmem:[%s5] sm:$0x1]
  %v287 = vlaneseq
  %v288 = vshrl.u32 %v287, 7
  %v289 = vsub.s32 0, %v288
  %v290 = vrot.slane %v285, %v289
  %v292 = vmul.f32 %v283, %v290
  %v293 = vmul.f32 %v284, %v290
  %v294 = vld [vmem:[%s6] sm:$0x1]
  %v296 = vlaneseq
  %v297 = vshrl.u32 %v296, 7
  %v298 = vsub.s32 0, %v297
  %v299 = vrot.slane %v294, %v298
  %v301 = vadd.f32 %v292, %v299
  %v302 = vadd.f32 %v293, %v299
  %303 = vst [vmem:[%s7] sm:$0xff] %v301
  %304 = vst [vmem:[%s7 + $0x8] sm:$0xff] %v302
  // Predicated region
  $region30: #{gamma_gpt_forward.9} parent=0 // pred_check
    _
  $region31: #{gamma_gpt_forward.9} parent=0 // pred_check_branch
    %306 = sbr.rel (0) target = $region33
  $region32: #{gamma_gpt_forward.9} parent=0 // pred_region
    _
  $region33: #{gamma_gpt_forward.9} parent=0 // pred_fallthru
    _
  // Predicated region
  $region34: #{gamma_gpt_forward.9} parent=0 // pred_check
    _
  $region35: #{gamma_gpt_forward.9} parent=0 // pred_check_branch
    %308 = sbr.rel (0) target = $region37
  $region36: #{gamma_gpt_forward.9} parent=0 // pred_region
    _
  $region37: #{gamma_gpt_forward.9} parent=0 // pred_fallthru
    _

// kernel: gamma_gpt_forward.13
$region0: #{gamma_gpt_forward.13}
  #allocation0 [shape = 'u32[]', space=smem, size = 0x4, offset = 0x4, fixed_abs, tag = 'smem constant byte address 0x4 - core index']
  #allocation1 [shape = 'u32[144,128]{1,0:T(1,128)}', space=vmem, size = 0x12000, scoped, tag = 'internal scratch']
  %s0 = inlined_call_operand.vmem [shape: f32[16,128], index: 0, kind: input, shape index: {}]
  %s1 = inlined_call_operand.vmem [shape: bf16[128,128], index: 1, kind: input, shape index: {}]
  %s2 = inlined_call_operand.vmem [shape: f32[1,128], index: 2, kind: input, shape index: {}]
  %s3 = inlined_call_operand.hbm [shape: f32[16,128], index: 3, kind: output, shape index: {}]
  %s4 = sld [smem:[#allocation0]]
  $region22: #{gamma_gpt_forward.13} parent=0
    _
  %s6 = ssub.s32 1, %s4
  %s7 = scalar_select 0, %s6, %s4
  $region1: #{gamma_gpt_forward.13} parent=0
    #allocation2 [shape = 'u8[8192]{0}', space=vmem, size = 0x2000, scoped, tag = 'output window, operand 0, single buffered']
    #allocation3 [shape = 's32[1]{0}', space=sflag, size = 0x4, scoped, tag = 'scoped memory for gamma_gpt_forward.13']
    %8 = vsyncpa [#allocation3], 0
    // Predicated region
    $region2: #{gamma_gpt_forward.13} parent=1 // pred_check
      _
    $region3: #{gamma_gpt_forward.13} parent=1 // pred_check_branch
      %10 = sbr.rel (0) target = $region5
    $region4: #{gamma_gpt_forward.13} parent=1 // pred_region
      _
    $region5: #{gamma_gpt_forward.13} parent=1 // pred_fallthru
      _
    // Predicated region
    $region6: #{gamma_gpt_forward.13} parent=1 // pred_check
      _
    $region7: #{gamma_gpt_forward.13} parent=1 // pred_check_branch
      %12 = sbr.rel (0) target = $region9
    $region8: #{gamma_gpt_forward.13} parent=1 // pred_region
      _
    $region9: #{gamma_gpt_forward.13} parent=1 // pred_fallthru
      _
    // Predicated region
    $region10: #{gamma_gpt_forward.13} parent=1 // pred_check
      _
    $region11: #{gamma_gpt_forward.13} parent=1 // pred_check_branch
      %14 = sbr.rel (0) target = $region13
    $region12: #{gamma_gpt_forward.13} parent=1 // pred_region
      _
    $region13: #{gamma_gpt_forward.13} parent=1 // pred_fallthru
      _
    %v16 = vld [vmem:[%s0] sm:$0xff]
    %v17 = vld [vmem:[%s0 + $0x8] sm:$0xff]
    %v18 = vpack.c.bf16 %v17, %v16
    %v19 = vld [vmem:[%s1] sm:$0xf]
    %v20 = vld [vmem:[%s1 + $0x4] sm:$0xf]
    %v21 = vld [vmem:[%s1 + $0x8] sm:$0xf]
    %v22 = vld [vmem:[%s1 + $0xc] sm:$0xf]
    %v23 = vld [vmem:[%s1 + $0x10] sm:$0xf]
    %v24 = vld [vmem:[%s1 + $0x14] sm:$0xf]
    %v25 = vld [vmem:[%s1 + $0x18] sm:$0xf]
    %v26 = vld [vmem:[%s1 + $0x1c] sm:$0xf]
    %v27 = vld [vmem:[%s1 + $0x20] sm:$0xf]
    %v28 = vld [vmem:[%s1 + $0x24] sm:$0xf]
    %v29 = vld [vmem:[%s1 + $0x28] sm:$0xf]
    %v30 = vld [vmem:[%s1 + $0x2c] sm:$0xf]
    %v31 = vld [vmem:[%s1 + $0x30] sm:$0xf]
    %v32 = vld [vmem:[%s1 + $0x34] sm:$0xf]
    %v33 = vld [vmem:[%s1 + $0x38] sm:$0xf]
    %v34 = vld [vmem:[%s1 + $0x3c] sm:$0xf]
    %v35 = vld [vmem:[%s2] sm:$0x1]
    %v37 = vlaneseq
    %v38 = vshrl.u32 %v37, 7
    %v39 = vsub.s32 0, %v38
    %v40 = vrot.slane %v35, %v39
    %v58 = vunpack.c.l.b16 %v19
    %v59 = vunpack.c.l.b16 %v20
    %v60 = vunpack.c.l.b16 %v21
    %v61 = vunpack.c.l.b16 %v22
    %v62 = vunpack.c.l.b16 %v23
    %v63 = vunpack.c.l.b16 %v24
    %v64 = vunpack.c.l.b16 %v25
    %v65 = vunpack.c.l.b16 %v26
    %v66 = vunpack.c.l.b16 %v27
    %v67 = vunpack.c.l.b16 %v28
    %v68 = vunpack.c.l.b16 %v29
    %v69 = vunpack.c.l.b16 %v30
    %v70 = vunpack.c.l.b16 %v31
    %v71 = vunpack.c.l.b16 %v32
    %v72 = vunpack.c.l.b16 %v33
    %v73 = vunpack.c.l.b16 %v34
    %v74 = vpack.c.b16 %v59, %v58
    %v75 = vpack.c.b16 %v61, %v60
    %v76 = vpack.c.b16 %v63, %v62
    %v77 = vpack.c.b16 %v65, %v64
    %v78 = vpack.c.b16 %v67, %v66
    %v79 = vpack.c.b16 %v69, %v68
    %v80 = vpack.c.b16 %v71, %v70
    %v81 = vpack.c.b16 %v73, %v72
    %90 = vmatprep.subr.bf16.mxu0 0
    %91 = vmatpush1.bf16.msra.mxu0 %v74
    %92 = vmatprep.subr.bf16.mxu0 0
    %93 = vmatpush1.bf16.msra.mxu0 %v75
    %94 = vmatprep.subr.bf16.mxu0 0
    %95 = vmatpush1.bf16.msra.mxu0 %v76
    %96 = vmatprep.subr.bf16.mxu0 0
    %97 = vmatpush1.bf16.msra.mxu0 %v77
    %98 = vmatprep.subr.bf16.mxu0 0
    %99 = vmatpush1.bf16.msra.mxu0 %v78
    %100 = vmatprep.subr.bf16.mxu0 0
    %101 = vmatpush1.bf16.msra.mxu0 %v79
    %102 = vmatprep.subr.bf16.mxu0 0
    %103 = vmatpush1.bf16.msra.mxu0 %v80
    %104 = vmatprep.subr.bf16.mxu0 0
    %105 = vmatpush1.bf16.msra.mxu0 %v81
    %106 = vmatprep.subr.bf16.mxu0 0
    %107 = vmatpush1.bf16.msra.mxu0 0
    %108 = vmatprep.subr.bf16.mxu0 0
    %109 = vmatpush1.bf16.msra.mxu0 0
    %110 = vmatprep.subr.bf16.mxu0 0
    %111 = vmatpush1.bf16.msra.mxu0 0
    %112 = vmatprep.subr.bf16.mxu0 0
    %113 = vmatpush1.bf16.msra.mxu0 0
    %114 = vmatprep.subr.bf16.mxu0 0
    %115 = vmatpush1.bf16.msra.mxu0 0
    %116 = vmatprep.subr.bf16.mxu0 0
    %117 = vmatpush1.bf16.msra.mxu0 0
    %118 = vmatprep.subr.bf16.mxu0 0
    %119 = vmatpush1.bf16.msra.mxu0 0
    %120 = vmatprep.subr.bf16.mxu0 0
    %121 = vmatpush1.bf16.msra.mxu0 0
    %122 = vmatprep.mubr.bf16.mxu0 0
    %123 = vmatmul.mubr.bf16.gmra.mrb[0].mxu0 %v18
    %v124 = vpop.f32.mrb[0].mxu0
    %v125 = vadd.f32 %v40, %v124
    %v126 = vpop.f32.mrb[0].mxu0
    %v127 = vpop.f32.mrb[0].mxu0
    %v128 = vadd.f32 %v40, %v127
    %v129 = vpop.f32.mrb[0].mxu0
    %130 = vdwg.mxu0
    %131 = vst [vmem:[#allocation2] sm:$0xff] %v125
    %132 = vst [vmem:[#allocation2 + $0x8] sm:$0xff] %v128
    // Predicated region
    $region14: #{gamma_gpt_forward.13} parent=1 // pred_check
      _
    $region15: #{gamma_gpt_forward.13} parent=1 // pred_check_branch
      %134 = sbr.rel (0) target = $region17
    $region16: #{gamma_gpt_forward.13} parent=1 // pred_region
      %s136 = ssub.s32 256, 256
      %137 = vsyncadd [#allocation3], %s136
      %s138 = sshll.u32 [#allocation2], 4
      %s139 = int_to_ptr.vmem [resolvable:$true] %s138
      %144 = dma.vmem_to_hbm [thread:$0]  %s139, 256, %s3, [#allocation3], 128, 128, 8
    $region17: #{gamma_gpt_forward.13} parent=1 // pred_fallthru
      _
    // Predicated region
    $region18: #{gamma_gpt_forward.13} parent=1 // pred_check
      _
    $region19: #{gamma_gpt_forward.13} parent=1 // pred_check_branch
      %146 = sbr.rel (0) target = $region21
    $region20: #{gamma_gpt_forward.13} parent=1 // pred_region
      %147 = dma.done [#allocation3], 256
    $region21: #{gamma_gpt_forward.13} parent=1 // pred_fallthru
      _
    %148 = vsyncpa [#allocation3], 1

// kernel: gamma_gpt_forward.7
$region0: #{gamma_gpt_forward.7}
  #allocation0 [shape = 'u32[]', space=smem, size = 0x4, offset = 0x4, fixed_abs, tag = 'smem constant byte address 0x4 - core index']
  #allocation1 [shape = 'u32[144,128]{1,0:T(1,128)}', space=vmem, size = 0x12000, scoped, tag = 'internal scratch']
  %s0 = inlined_call_operand.vmem [shape: f32[16,128], index: 0, kind: input, shape index: {}]
  %s1 = inlined_call_operand.vmem [shape: bf16[128,128], index: 1, kind: input, shape index: {}]
  %s2 = inlined_call_operand.vmem [shape: f32[1,128], index: 2, kind: input, shape index: {}]
  %s3 = inlined_call_operand.vmem [shape: f32[16,128], index: 3, kind: output, shape index: {}]
  %s4 = sld [smem:[#allocation0]]
  $region22: #{gamma_gpt_forward.7} parent=0
    _
  %s6 = ssub.s32 1, %s4
  %s7 = scalar_select 0, %s6, %s4
  // Predicated region
  $region2: #{gamma_gpt_forward.7} parent=0 // pred_check
    _
  $region3: #{gamma_gpt_forward.7} parent=0 // pred_check_branch
    %9 = sbr.rel (0) target = $region5
  $region4: #{gamma_gpt_forward.7} parent=0 // pred_region
    _
  $region5: #{gamma_gpt_forward.7} parent=0 // pred_fallthru
    _
  // Predicated region
  $region6: #{gamma_gpt_forward.7} parent=0 // pred_check
    _
  $region7: #{gamma_gpt_forward.7} parent=0 // pred_check_branch
    %11 = sbr.rel (0) target = $region9
  $region8: #{gamma_gpt_forward.7} parent=0 // pred_region
    _
  $region9: #{gamma_gpt_forward.7} parent=0 // pred_fallthru
    _
  // Predicated region
  $region10: #{gamma_gpt_forward.7} parent=0 // pred_check
    _
  $region11: #{gamma_gpt_forward.7} parent=0 // pred_check_branch
    %13 = sbr.rel (0) target = $region13
  $region12: #{gamma_gpt_forward.7} parent=0 // pred_region
    _
  $region13: #{gamma_gpt_forward.7} parent=0 // pred_fallthru
    _
  %v15 = vld [vmem:[%s0] sm:$0xff]
  %v16 = vld [vmem:[%s0 + $0x8] sm:$0xff]
  %v17 = vpack.c.bf16 %v16, %v15
  %v18 = vld [vmem:[%s1] sm:$0xf]
  %v19 = vld [vmem:[%s1 + $0x4] sm:$0xf]
  %v20 = vld [vmem:[%s1 + $0x8] sm:$0xf]
  %v21 = vld [vmem:[%s1 + $0xc] sm:$0xf]
  %v22 = vld [vmem:[%s1 + $0x10] sm:$0xf]
  %v23 = vld [vmem:[%s1 + $0x14] sm:$0xf]
  %v24 = vld [vmem:[%s1 + $0x18] sm:$0xf]
  %v25 = vld [vmem:[%s1 + $0x1c] sm:$0xf]
  %v26 = vld [vmem:[%s1 + $0x20] sm:$0xf]
  %v27 = vld [vmem:[%s1 + $0x24] sm:$0xf]
  %v28 = vld [vmem:[%s1 + $0x28] sm:$0xf]
  %v29 = vld [vmem:[%s1 + $0x2c] sm:$0xf]
  %v30 = vld [vmem:[%s1 + $0x30] sm:$0xf]
  %v31 = vld [vmem:[%s1 + $0x34] sm:$0xf]
  %v32 = vld [vmem:[%s1 + $0x38] sm:$0xf]
  %v33 = vld [vmem:[%s1 + $0x3c] sm:$0xf]
  %v34 = vld [vmem:[%s2] sm:$0x1]
  %v36 = vlaneseq
  %v37 = vshrl.u32 %v36, 7
  %v38 = vsub.s32 0, %v37
  %v39 = vrot.slane %v34, %v38
  %v57 = vunpack.c.l.b16 %v18
  %v58 = vunpack.c.l.b16 %v19
  %v59 = vunpack.c.l.b16 %v20
  %v60 = vunpack.c.l.b16 %v21
  %v61 = vunpack.c.l.b16 %v22
  %v62 = vunpack.c.l.b16 %v23
  %v63 = vunpack.c.l.b16 %v24
  %v64 = vunpack.c.l.b16 %v25
  %v65 = vunpack.c.l.b16 %v26
  %v66 = vunpack.c.l.b16 %v27
  %v67 = vunpack.c.l.b16 %v28
  %v68 = vunpack.c.l.b16 %v29
  %v69 = vunpack.c.l.b16 %v30
  %v70 = vunpack.c.l.b16 %v31
  %v71 = vunpack.c.l.b16 %v32
  %v72 = vunpack.c.l.b16 %v33
  %v73 = vpack.c.b16 %v58, %v57
  %v74 = vpack.c.b16 %v60, %v59
  %v75 = vpack.c.b16 %v62, %v61
  %v76 = vpack.c.b16 %v64, %v63
  %v77 = vpack.c.b16 %v66, %v65
  %v78 = vpack.c.b16 %v68, %v67
  %v79 = vpack.c.b16 %v70, %v69
  %v80 = vpack.c.b16 %v72, %v71
  %89 = vmatprep.subr.bf16.mxu0 0
  %90 = vmatpush1.bf16.msra.mxu0 %v73
  %91 = vmatprep.subr.bf16.mxu0 0
  %92 = vmatpush1.bf16.msra.mxu0 %v74
  %93 = vmatprep.subr.bf16.mxu0 0
  %94 = vmatpush1.bf16.msra.mxu0 %v75
  %95 = vmatprep.subr.bf16.mxu0 0
  %96 = vmatpush1.bf16.msra.mxu0 %v76
  %97 = vmatprep.subr.bf16.mxu0 0
  %98 = vmatpush1.bf16.msra.mxu0 %v77
  %99 = vmatprep.subr.bf16.mxu0 0
  %100 = vmatpush1.bf16.msra.mxu0 %v78
  %101 = vmatprep.subr.bf16.mxu0 0
  %102 = vmatpush1.bf16.msra.mxu0 %v79
  %103 = vmatprep.subr.bf16.mxu0 0
  %104 = vmatpush1.bf16.msra.mxu0 %v80
  %105 = vmatprep.subr.bf16.mxu0 0
  %106 = vmatpush1.bf16.msra.mxu0 0
  %107 = vmatprep.subr.bf16.mxu0 0
  %108 = vmatpush1.bf16.msra.mxu0 0
  %109 = vmatprep.subr.bf16.mxu0 0
  %110 = vmatpush1.bf16.msra.mxu0 0
  %111 = vmatprep.subr.bf16.mxu0 0
  %112 = vmatpush1.bf16.msra.mxu0 0
  %113 = vmatprep.subr.bf16.mxu0 0
  %114 = vmatpush1.bf16.msra.mxu0 0
  %115 = vmatprep.subr.bf16.mxu0 0
  %116 = vmatpush1.bf16.msra.mxu0 0
  %117 = vmatprep.subr.bf16.mxu0 0
  %118 = vmatpush1.bf16.msra.mxu0 0
  %119 = vmatprep.subr.bf16.mxu0 0
  %120 = vmatpush1.bf16.msra.mxu0 0
  %121 = vmatprep.mubr.bf16.mxu0 0
  %122 = vmatmul.mubr.bf16.gmra.mrb[0].mxu0 %v17
  %v123 = vpop.f32.mrb[0].mxu0
  %v124 = vadd.f32 %v39, %v123
  %v125 = vpop.f32.mrb[0].mxu0
  %v126 = vpop.f32.mrb[0].mxu0
  %v127 = vadd.f32 %v39, %v126
  %v128 = vpop.f32.mrb[0].mxu0
  %129 = vdwg.mxu0
  %130 = vst [vmem:[%s3] sm:$0xff] %v124
  %131 = vst [vmem:[%s3 + $0x8] sm:$0xff] %v127
  // Predicated region
  $region14: #{gamma_gpt_forward.7} parent=0 // pred_check
    _
  $region15: #{gamma_gpt_forward.7} parent=0 // pred_check_branch
    %133 = sbr.rel (0) target = $region17
  $region16: #{gamma_gpt_forward.7} parent=0 // pred_region
    _
  $region17: #{gamma_gpt_forward.7} parent=0 // pred_fallthru
    _
  // Predicated region
  $region18: #{gamma_gpt_forward.7} parent=0 // pred_check
    _
  $region19: #{gamma_gpt_forward.7} parent=0 // pred_check_branch
    %135 = sbr.rel (0) target = $region21
  $region20: #{gamma_gpt_forward.7} parent=0 // pred_region
    _
  $region21: #{gamma_gpt_forward.7} parent=0 // pred_fallthru
    _

// kernel: gamma_gpt_forward.8
$region0: #{gamma_gpt_forward.8}
  #allocation0 [shape = 'u32[]', space=smem, size = 0x4, offset = 0x4, fixed_abs, tag = 'smem constant byte address 0x4 - core index']
  #allocation1 [shape = 'u32[144,128]{1,0:T(1,128)}', space=vmem, size = 0x12000, scoped, tag = 'internal scratch']
  %s0 = inlined_call_operand.vmem [shape: f32[2,8,128], index: 0, kind: input, shape index: {}]
  %s1 = inlined_call_operand.vmem [shape: f32[2,1,8], index: 1, kind: input, shape index: {}]
  %s2 = inlined_call_operand.vmem [shape: f32[2,8,128], index: 2, kind: input, shape index: {}]
  %s3 = inlined_call_operand.vmem [shape: bf16[32,128], index: 3, kind: input, shape index: {}]
  %s4 = inlined_call_operand.vmem [shape: f32[1,128], index: 4, kind: input, shape index: {}]
  %s5 = inlined_call_operand.vmem [shape: f32[1,128], index: 5, kind: input, shape index: {}]
  %s6 = inlined_call_operand.vmem [shape: f32[1,128], index: 6, kind: input, shape index: {}]
  %s7 = inlined_call_operand.vmem [shape: f32[2,8,128], index: 7, kind: output, shape index: {}]
  %s8 = sld [smem:[#allocation0]]
  $region61: #{gamma_gpt_forward.8} parent=0
    _
  %s10 = ssub.s32 1, %s8
  %s11 = scalar_select 0, %s10, %s8
  loop: start=0, step=1, limit=4
  $region2: #{gamma_gpt_forward.8} parent=0 // loop_pre_header
    _
  $region3: #{gamma_gpt_forward.8} parent=0 // loop_header
    %s13 = sphi 0, %s17
    %p14 = scmp.ge.s32.totalorder %s13, 4
    %s23 = sphi 0, %s25
    %s26 = sphi 0, %s23
    %s27 = sphi 0, %s26
    %s43 = sphi 0, %s27
    %s49 = sphi 0, %s51
    %s52 = sphi 0, %s49
    %s53 = sphi 0, %s52
    %s69 = sphi 0, %s53
    %s75 = sphi 0, %s77
    %s78 = sphi 0, %s75
    %s79 = sphi 0, %s78
    %s95 = sphi 0, %s79
    %s99 = sphi 0, %s99
    %s101 = sphi 0, %s99
    %s102 = sphi 0, %s101
    %s116 = sphi 0, %s102
    %s120 = sphi 0, %s120
    %s122 = sphi 0, %s120
    %s123 = sphi 0, %s122
    %s137 = sphi 0, %s123
    %s141 = sphi 0, %s141
    %s143 = sphi 0, %s141
    %s144 = sphi 0, %s143
    %s158 = sphi 0, %s144
    %s162 = sphi 0, %s162
    %s164 = sphi 0, %s162
    %s165 = sphi 0, %s164
    %s179 = sphi 0, %s165
    %s185 = sphi 0, %s187
    %s188 = sphi 0, %s185
    %s189 = sphi 0, %s188
    %s205 = sphi 0, %s189
  $region4: #{gamma_gpt_forward.8} parent=0 // loop_header_branch
    %16 = sbr.rel (%p14) target = $region8
  $region5: #{gamma_gpt_forward.8} parent=0 // loop_body
    %s18 = ssub.s32 %s13, 1
    %s19 = ssub.s32 %s13, 2
    %s20 = sadd.s32 %s13, 1
    %s21 = ssub.s32 %s13, %s20
    %p22 = scmp.eq.s32.totalorder %s21, 0
    %s24 = sadd.s32 %s23, 1
    %s25 = scalar_select %p22, %s23, %s24
    %p28 = pneg %p22
    %p29 = scmp.eq.s32.totalorder %s13, 1
    %p30 = por %p28, %p29
    %p31 = scmp.ne.s32.totalorder %s23, %s26
    %p32 = scmp.eq.s32.totalorder %s13, 0
    %p33 = por %p31, %p32
    %p34 = scmp.ne.s32.totalorder %s23, %s26
    %p35 = scmp.eq.s32.totalorder %s18, 1
    %p36 = por %p34, %p35
    %p37 = scmp.ne.s32.totalorder %s26, %s27
    %p38 = scmp.eq.s32.totalorder %s18, 0
    %p39 = por %p37, %p38
    %p40 = scmp.ne.s32.totalorder %s26, %s27
    %p41 = scmp.eq.s32.totalorder %s19, 1
    %p42 = por %p40, %p41
    %p44 = scmp.ne.s32.totalorder %s27, %s43
    %p45 = scmp.eq.s32.totalorder %s19, 0
    %p46 = por %p44, %p45
    %s47 = ssub.s32 %s13, %s20
    %p48 = scmp.eq.s32.totalorder %s47, 0
    %s50 = sadd.s32 %s49, 1
    %s51 = scalar_select %p48, %s49, %s50
    %p54 = pneg %p48
    %p55 = scmp.eq.s32.totalorder %s13, 1
    %p56 = por %p54, %p55
    %p57 = scmp.ne.s32.totalorder %s49, %s52
    %p58 = scmp.eq.s32.totalorder %s13, 0
    %p59 = por %p57, %p58
    %p60 = scmp.ne.s32.totalorder %s49, %s52
    %p61 = scmp.eq.s32.totalorder %s18, 1
    %p62 = por %p60, %p61
    %p63 = scmp.ne.s32.totalorder %s52, %s53
    %p64 = scmp.eq.s32.totalorder %s18, 0
    %p65 = por %p63, %p64
    %p66 = scmp.ne.s32.totalorder %s52, %s53
    %p67 = scmp.eq.s32.totalorder %s19, 1
    %p68 = por %p66, %p67
    %p70 = scmp.ne.s32.totalorder %s53, %s69
    %p71 = scmp.eq.s32.totalorder %s19, 0
    %p72 = por %p70, %p71
    %s73 = ssub.s32 %s13, %s20
    %p74 = scmp.eq.s32.totalorder %s73, 0
    %s76 = sadd.s32 %s75, 1
    %s77 = scalar_select %p74, %s75, %s76
    %p80 = pneg %p74
    %p81 = scmp.eq.s32.totalorder %s13, 1
    %p82 = por %p80, %p81
    %p83 = scmp.ne.s32.totalorder %s75, %s78
    %p84 = scmp.eq.s32.totalorder %s13, 0
    %p85 = por %p83, %p84
    %p86 = scmp.ne.s32.totalorder %s75, %s78
    %p87 = scmp.eq.s32.totalorder %s18, 1
    %p88 = por %p86, %p87
    %p89 = scmp.ne.s32.totalorder %s78, %s79
    %p90 = scmp.eq.s32.totalorder %s18, 0
    %p91 = por %p89, %p90
    %p92 = scmp.ne.s32.totalorder %s78, %s79
    %p93 = scmp.eq.s32.totalorder %s19, 1
    %p94 = por %p92, %p93
    %p96 = scmp.ne.s32.totalorder %s79, %s95
    %p97 = scmp.eq.s32.totalorder %s19, 0
    %p98 = por %p96, %p97
    %s100 = sadd.s32 %s99, 1
    %p103 = scmp.eq.s32.totalorder %s13, 1
    %p104 = scmp.ne.s32.totalorder %s99, %s101
    %p105 = scmp.eq.s32.totalorder %s13, 0
    %p106 = por %p104, %p105
    %p107 = scmp.ne.s32.totalorder %s99, %s101
    %p108 = scmp.eq.s32.totalorder %s18, 1
    %p109 = por %p107, %p108
    %p110 = scmp.ne.s32.totalorder %s101, %s102
    %p111 = scmp.eq.s32.totalorder %s18, 0
    %p112 = por %p110, %p111
    %p113 = scmp.ne.s32.totalorder %s101, %s102
    %p114 = scmp.eq.s32.totalorder %s19, 1
    %p115 = por %p113, %p114
    %p117 = scmp.ne.s32.totalorder %s102, %s116
    %p118 = scmp.eq.s32.totalorder %s19, 0
    %p119 = por %p117, %p118
    %s121 = sadd.s32 %s120, 1
    %p124 = scmp.eq.s32.totalorder %s13, 1
    %p125 = scmp.ne.s32.totalorder %s120, %s122
    %p126 = scmp.eq.s32.totalorder %s13, 0
    %p127 = por %p125, %p126
    %p128 = scmp.ne.s32.totalorder %s120, %s122
    %p129 = scmp.eq.s32.totalorder %s18, 1
    %p130 = por %p128, %p129
    %p131 = scmp.ne.s32.totalorder %s122, %s123
    %p132 = scmp.eq.s32.totalorder %s18, 0
    %p133 = por %p131, %p132
    %p134 = scmp.ne.s32.totalorder %s122, %s123
    %p135 = scmp.eq.s32.totalorder %s19, 1
    %p136 = por %p134, %p135
    %p138 = scmp.ne.s32.totalorder %s123, %s137
    %p139 = scmp.eq.s32.totalorder %s19, 0
    %p140 = por %p138, %p139
    %s142 = sadd.s32 %s141, 1
    %p145 = scmp.eq.s32.totalorder %s13, 1
    %p146 = scmp.ne.s32.totalorder %s141, %s143
    %p147 = scmp.eq.s32.totalorder %s13, 0
    %p148 = por %p146, %p147
    %p149 = scmp.ne.s32.totalorder %s141, %s143
    %p150 = scmp.eq.s32.totalorder %s18, 1
    %p151 = por %p149, %p150
    %p152 = scmp.ne.s32.totalorder %s143, %s144
    %p153 = scmp.eq.s32.totalorder %s18, 0
    %p154 = por %p152, %p153
    %p155 = scmp.ne.s32.totalorder %s143, %s144
    %p156 = scmp.eq.s32.totalorder %s19, 1
    %p157 = por %p155, %p156
    %p159 = scmp.ne.s32.totalorder %s144, %s158
    %p160 = scmp.eq.s32.totalorder %s19, 0
    %p161 = por %p159, %p160
    %s163 = sadd.s32 %s162, 1
    %p166 = scmp.eq.s32.totalorder %s13, 1
    %p167 = scmp.ne.s32.totalorder %s162, %s164
    %p168 = scmp.eq.s32.totalorder %s13, 0
    %p169 = por %p167, %p168
    %p170 = scmp.ne.s32.totalorder %s162, %s164
    %p171 = scmp.eq.s32.totalorder %s18, 1
    %p172 = por %p170, %p171
    %p173 = scmp.ne.s32.totalorder %s164, %s165
    %p174 = scmp.eq.s32.totalorder %s18, 0
    %p175 = por %p173, %p174
    %p176 = scmp.ne.s32.totalorder %s164, %s165
    %p177 = scmp.eq.s32.totalorder %s19, 1
    %p178 = por %p176, %p177
    %p180 = scmp.ne.s32.totalorder %s165, %s179
    %p181 = scmp.eq.s32.totalorder %s19, 0
    %p182 = por %p180, %p181
    %s183 = ssub.s32 %s13, %s20
    %p184 = scmp.eq.s32.totalorder %s183, 0
    %s186 = sadd.s32 %s185, 1
    %s187 = scalar_select %p184, %s185, %s186
    %p190 = pneg %p184
    %p191 = scmp.eq.s32.totalorder %s13, 1
    %p192 = por %p190, %p191
    %p193 = scmp.ne.s32.totalorder %s185, %s188
    %p194 = scmp.eq.s32.totalorder %s13, 0
    %p195 = por %p193, %p194
    %p196 = scmp.ne.s32.totalorder %s185, %s188
    %p197 = scmp.eq.s32.totalorder %s18, 1
    %p198 = por %p196, %p197
    %p199 = scmp.ne.s32.totalorder %s188, %s189
    %p200 = scmp.eq.s32.totalorder %s18, 0
    %p201 = por %p199, %p200
    %p202 = scmp.ne.s32.totalorder %s188, %s189
    %p203 = scmp.eq.s32.totalorder %s19, 1
    %p204 = por %p202, %p203
    %p206 = scmp.ne.s32.totalorder %s189, %s205
    %p207 = scmp.eq.s32.totalorder %s19, 0
    %p208 = por %p206, %p207
    %p209 = scmp.le.s32.totalorder 1, %s13
    %p210 = scmp.lt.s32.totalorder %s13, 3
    %p211 = pnand %p209, %p210
    %p212 = pneg %p211
    // Predicated region
    $region9: #{gamma_gpt_forward.8} parent=5 // pred_check
      _
    $region10: #{gamma_gpt_forward.8} parent=5 // pred_check_branch
      %214 = sbr.rel (%p211) target = $region12
    $region11: #{gamma_gpt_forward.8} parent=5 // pred_region
      %s215 = ssub.s32 %s13, 1
      // Predicated region
      $region13: #{gamma_gpt_forward.8} parent=11 // pred_check
        %p216 = pneg %p112
      $region14: #{gamma_gpt_forward.8} parent=11 // pred_check_branch
        %218 = sbr.rel (%p216) target = $region16
      $region15: #{gamma_gpt_forward.8} parent=11 // pred_region
        _
      $region16: #{gamma_gpt_forward.8} parent=11 // pred_fallthru
        _
      // Predicated region
      $region17: #{gamma_gpt_forward.8} parent=11 // pred_check
        %p219 = pneg %p133
      $region18: #{gamma_gpt_forward.8} parent=11 // pred_check_branch
        %221 = sbr.rel (%p219) target = $region20
      $region19: #{gamma_gpt_forward.8} parent=11 // pred_region
        _
      $region20: #{gamma_gpt_forward.8} parent=11 // pred_fallthru
        _
      // Predicated region
      $region21: #{gamma_gpt_forward.8} parent=11 // pred_check
        %p222 = pneg %p154
      $region22: #{gamma_gpt_forward.8} parent=11 // pred_check_branch
        %224 = sbr.rel (%p222) target = $region24
      $region23: #{gamma_gpt_forward.8} parent=11 // pred_region
        _
      $region24: #{gamma_gpt_forward.8} parent=11 // pred_fallthru
        _
      // Predicated region
      $region25: #{gamma_gpt_forward.8} parent=11 // pred_check
        %p225 = pneg %p175
      $region26: #{gamma_gpt_forward.8} parent=11 // pred_check_branch
        %227 = sbr.rel (%p225) target = $region28
      $region27: #{gamma_gpt_forward.8} parent=11 // pred_region
        _
      $region28: #{gamma_gpt_forward.8} parent=11 // pred_fallthru
        _
    $region12: #{gamma_gpt_forward.8} parent=5 // pred_fallthru
      _
    %p228 = scmp.lt.s32.totalorder %s13, 2
    // Predicated region
    $region29: #{gamma_gpt_forward.8} parent=5 // pred_check
      %p229 = pneg %p228
    $region30: #{gamma_gpt_forward.8} parent=5 // pred_check_branch
      %231 = sbr.rel (%p229) target = $region32
    $region31: #{gamma_gpt_forward.8} parent=5 // pred_region
      // Predicated region
      $region33: #{gamma_gpt_forward.8} parent=31 // pred_check
        %p232 = pneg %p33
      $region34: #{gamma_gpt_forward.8} parent=31 // pred_check_branch
        %234 = sbr.rel (%p232) target = $region36
      $region35: #{gamma_gpt_forward.8} parent=31 // pred_region
        %p235 = scmp.lt.s32.totalorder %s13, 1
        %s236 = scalar_select %p235, %s13, 1
        %s237 = smul.addr %s236, 8
        %s238 = scalar_lea.vmem %s0, %s237
      $region36: #{gamma_gpt_forward.8} parent=31 // pred_fallthru
        _
      // Predicated region
      $region37: #{gamma_gpt_forward.8} parent=31 // pred_check
        %p239 = pneg %p59
      $region38: #{gamma_gpt_forward.8} parent=31 // pred_check_branch
        %241 = sbr.rel (%p239) target = $region40
      $region39: #{gamma_gpt_forward.8} parent=31 // pred_region
        %p242 = scmp.lt.s32.totalorder %s13, 1
        %s243 = scalar_select %p242, %s13, 1
        %s244 = scalar_lea.vmem %s1, %s243
      $region40: #{gamma_gpt_forward.8} parent=31 // pred_fallthru
        _
      // Predicated region
      $region41: #{gamma_gpt_forward.8} parent=31 // pred_check
        %p245 = pneg %p85
      $region42: #{gamma_gpt_forward.8} parent=31 // pred_check_branch
        %247 = sbr.rel (%p245) target = $region44
      $region43: #{gamma_gpt_forward.8} parent=31 // pred_region
        %p248 = scmp.lt.s32.totalorder %s13, 1
        %s249 = scalar_select %p248, %s13, 1
        %s250 = smul.addr %s249, 8
        %s251 = scalar_lea.vmem %s2, %s250
      $region44: #{gamma_gpt_forward.8} parent=31 // pred_fallthru
        _
    $region32: #{gamma_gpt_forward.8} parent=5 // pred_fallthru
      _
    %p252 = scmp.le.s32.totalorder 1, %s13
    %p253 = scmp.lt.s32.totalorder %s13, 3
    %p254 = pnand %p252, %p253
    %p255 = pneg %p254
    // Predicated region
    $region45: #{gamma_gpt_forward.8} parent=5 // pred_check
      _
    $region46: #{gamma_gpt_forward.8} parent=5 // pred_check_branch
      %257 = sbr.rel (%p254) target = $region48
    $region47: #{gamma_gpt_forward.8} parent=5 // pred_region
      %s258 = ssub.s32 %s13, 1
      %p259 = scmp.lt.s32.totalorder %s18, 1
      %s260 = scalar_select %p259, %s18, 1
      %s261 = smul.addr %s260, 8
      %s262 = scalar_lea.vmem %s0, %s261
      %p263 = pneg %p39
      %p264 = pneg %p36
      %p265 = scmp.lt.s32.totalorder %s18, 1
      %s266 = scalar_select %p265, %s18, 1
      %s267 = scalar_lea.vmem %s1, %s266
      %p268 = pneg %p65
      %p269 = pneg %p62
      %p270 = scmp.lt.s32.totalorder %s18, 1
      %s271 = scalar_select %p270, %s18, 1
      %s272 = smul.addr %s271, 8
      %s273 = scalar_lea.vmem %s2, %s272
      %p274 = pneg %p91
      %p275 = pneg %p88
      %p276 = pneg %p112
      %p277 = pneg %p109
      %p278 = pneg %p133
      %p279 = pneg %p130
      %p280 = pneg %p154
      %p281 = pneg %p151
      %p282 = pneg %p175
      %p283 = pneg %p172
      %p284 = pneg %p201
      %p285 = pneg %p198
      %p286 = scmp.lt.s32.totalorder %s18, 1
      %s287 = scalar_select %p286, %s18, 1
      %s288 = smul.addr %s287, 8
      %s289 = scalar_lea.vmem %s7, %s288
      %p290 = scmp.lt.s32.totalorder %s18, 1
      %s291 = scalar_select %p290, %s18, 1
      %s292 = smul.addr %s291, 8
      %s293 = scalar_lea.vmem %s0, %s292
      %p294 = scmp.lt.s32.totalorder %s18, 1
      %s295 = scalar_select %p294, %s18, 1
      %s296 = scalar_lea.vmem %s1, %s295
      %p297 = scmp.lt.s32.totalorder %s18, 1
      %s298 = scalar_select %p297, %s18, 1
      %s299 = smul.addr %s298, 8
      %s300 = scalar_lea.vmem %s2, %s299
      %p301 = scmp.lt.s32.totalorder %s18, 1
      %s302 = scalar_select %p301, %s18, 1
      %s303 = smul.addr %s302, 8
      %s304 = scalar_lea.vmem %s7, %s303
      %v306 = vld [vmem:[%s293] sm:$0xff]
      %v307 = vld [vmem:[%s296] sm:$0x1]
      %v308 = vld [vmem:[%s300] sm:$0xff]
      %v309 = vlaneseq
      %v310 = vshrl.u32 %v309, 7
      %v311 = vlaneseq
      %v312 = vand.u32 %v311, 127
      %vm313 = vcmp.gt.s32.totalorder %v312, %v310
      %vm314 = vcmp.gt.f32.partialorder %v307, 0.0
      %v315 = vsel %vm314, 1, 0
      %v316 = vlaneseq
      %v317 = vshrl.u32 %v316, 7
      %v318 = vsub.s32 0, %v317
      %v319 = vrot.slane %v315, %v318
      %vm320 = vcmp.eq.s32.totalorder %v319, 1
      %vm321 = vmor %vm313, %vm320
      %v322 = vmul.f32 %v306, 0.35355338
      %v323 = vpack.c.bf16 %v322, %v322
      %v324 = vpack.c.bf16 %v306, %v306
      %326 = vrot.lane.b32.xlu0 %v324, 96
      %v327 = vpop.permute.xlu0 %326
      %vm328 = vcmask 64512
      %v330 = vsel %vm328, %v323, 0
      %v333 = vsel %vm328, %v327, 0
      %335 = vmatprep.subr.bf16.mxu0 0
      %336 = vmatpush1.bf16.xpose.msra.mxu0 %v333
      %337 = vmatprep.subr.bf16.mxu0 0
      %338 = vmatpush1.bf16.xpose.msra.mxu0 0
      %339 = vmatprep.subr.bf16.mxu0 0
      %340 = vmatpush1.bf16.xpose.msra.mxu0 0
      %341 = vmatprep.subr.bf16.mxu0 0
      %342 = vmatpush1.bf16.xpose.msra.mxu0 0
      %343 = vmatprep.subr.bf16.mxu0 0
      %344 = vmatpush1.bf16.xpose.msra.mxu0 0
      %345 = vmatprep.subr.bf16.mxu0 0
      %346 = vmatpush1.bf16.xpose.msra.mxu0 0
      %347 = vmatprep.subr.bf16.mxu0 0
      %348 = vmatpush1.bf16.xpose.msra.mxu0 0
      %349 = vmatprep.subr.bf16.mxu0 0
      %350 = vmatpush1.bf16.xpose.msra.mxu0 0
      %351 = vmatprep.subr.bf16.mxu0 0
      %352 = vmatpush1.bf16.xpose.msra.mxu0 0
      %353 = vmatprep.subr.bf16.mxu0 0
      %354 = vmatpush1.bf16.xpose.msra.mxu0 0
      %355 = vmatprep.subr.bf16.mxu0 0
      %356 = vmatpush1.bf16.xpose.msra.mxu0 0
      %357 = vmatprep.subr.bf16.mxu0 0
      %358 = vmatpush1.bf16.xpose.msra.mxu0 0
      %359 = vmatprep.subr.bf16.mxu0 0
      %360 = vmatpush1.bf16.xpose.msra.mxu0 0
      %361 = vmatprep.subr.bf16.mxu0 0
      %362 = vmatpush1.bf16.xpose.msra.mxu0 0
      %363 = vmatprep.subr.bf16.mxu0 0
      %364 = vmatpush1.bf16.xpose.msra.mxu0 0
      %365 = vmatprep.subr.bf16.mxu0 0
      %366 = vmatpush1.bf16.xpose.msra.mxu0 0
      %367 = vmatprep.mubr.bf16.mxu0 0
      %368 = vmatmul.mubr.bf16.gmra.mrb[0].mxu0 %v330
      %v369 = vpop.f32.mrb[0].mxu0
      %v370 = vadd.f32 0.0, %v369
      %v371 = vpop.f32.mrb[0].mxu0
      %v372 = vpop.f32.mrb[0].mxu0
      %v373 = vpop.f32.mrb[0].mxu0
      %374 = vdwg.mxu0
      %v375 = vsel %vm321, -1e+09, %v370
      %v376 = vsel %vm328, %v375, -inf
      %377 = vmax.xlane.f32.xlu0 %v376
      %v378 = vpop.xlane.xlu0 %377
      %v379 = vsub.f32 %v375, %v378
      %v380 = vmul.f32 %v379, 1.442695
      %v381 = vpow.pop %v380
      %v382 = vsel %vm328, %v381, 0.0
      %383 = vadd.xlane.f32.xlu0 %v382
      %v384 = vpop.xlane.xlu0 %383
      %v385 = vrcp.pop %v384
      %v386 = vmul.f32 %v381, %v385
      %v387 = vpack.c.bf16 %v386, %v386
      %388 = vrot.lane.b32.xlu0 %v324, 64
      %v389 = vpop.permute.xlu0 %388
      %v391 = vsel %vm328, %v387, 0
      %vm393 = vcmask 1043456
      %v395 = vsel %vm393, %v389, 0
      %397 = vmatprep.subr.bf16.mxu0 0
      %398 = vmatpush1.bf16.msra.mxu0 %v395
      %399 = vmatprep.subr.bf16.mxu0 0
      %400 = vmatpush1.bf16.msra.mxu0 0
      %401 = vmatprep.subr.bf16.mxu0 0
      %402 = vmatpush1.bf16.msra.mxu0 0
      %403 = vmatprep.subr.bf16.mxu0 0
      %404 = vmatpush1.bf16.msra.mxu0 0
      %405 = vmatprep.subr.bf16.mxu0 0
      %406 = vmatpush1.bf16.msra.mxu0 0
      %407 = vmatprep.subr.bf16.mxu0 0
      %408 = vmatpush1.bf16.msra.mxu0 0
      %409 = vmatprep.subr.bf16.mxu0 0
      %410 = vmatpush1.bf16.msra.mxu0 0
      %411 = vmatprep.subr.bf16.mxu0 0
      %412 = vmatpush1.bf16.msra.mxu0 0
      %413 = vmatprep.subr.bf16.mxu0 0
      %414 = vmatpush1.bf16.msra.mxu0 0
      %415 = vmatprep.subr.bf16.mxu0 0
      %416 = vmatpush1.bf16.msra.mxu0 0
      %417 = vmatprep.subr.bf16.mxu0 0
      %418 = vmatpush1.bf16.msra.mxu0 0
      %419 = vmatprep.subr.bf16.mxu0 0
      %420 = vmatpush1.bf16.msra.mxu0 0
      %421 = vmatprep.subr.bf16.mxu0 0
      %422 = vmatpush1.bf16.msra.mxu0 0
      %423 = vmatprep.subr.bf16.mxu0 0
      %424 = vmatpush1.bf16.msra.mxu0 0
      %425 = vmatprep.subr.bf16.mxu0 0
      %426 = vmatpush1.bf16.msra.mxu0 0
      %427 = vmatprep.subr.bf16.mxu0 0
      %428 = vmatpush1.bf16.msra.mxu0 0
      %429 = vmatprep.mubr.bf16.mxu0 0
      %430 = vmatmul.mubr.bf16.gmra.mrb[0].mxu0 %v391
      %v431 = vpop.f32.mrb[0].mxu0
      %v432 = vadd.f32 0.0, %v431
      %v433 = vpop.f32.mrb[0].mxu0
      %v434 = vpop.f32.mrb[0].mxu0
      %v435 = vpop.f32.mrb[0].mxu0
      %436 = vdwg.mxu0
      %438 = vrot.lane.b32.xlu0 %v323, 120
      %v439 = vpop.permute.xlu0 %438
      %440 = vrot.lane.b32.xlu0 %v324, 88
      %v441 = vpop.permute.xlu0 %440
      %v443 = vsel %vm328, %v439, 0
      %v446 = vsel %vm328, %v441, 0
      %448 = vmatprep.subr.bf16.mxu0 0
      %449 = vmatpush1.bf16.xpose.msra.mxu0 %v446
      %450 = vmatprep.subr.bf16.mxu0 0
      %451 = vmatpush1.bf16.xpose.msra.mxu0 0
      %452 = vmatprep.subr.bf16.mxu0 0
      %453 = vmatpush1.bf16.xpose.msra.mxu0 0
      %454 = vmatprep.subr.bf16.mxu0 0
      %455 = vmatpush1.bf16.xpose.msra.mxu0 0
      %456 = vmatprep.subr.bf16.mxu0 0
      %457 = vmatpush1.bf16.xpose.msra.mxu0 0
      %458 = vmatprep.subr.bf16.mxu0 0
      %459 = vmatpush1.bf16.xpose.msra.mxu0 0
      %460 = vmatprep.subr.bf16.mxu0 0
      %461 = vmatpush1.bf16.xpose.msra.mxu0 0
      %462 = vmatprep.subr.bf16.mxu0 0
      %463 = vmatpush1.bf16.xpose.msra.mxu0 0
      %464 = vmatprep.subr.bf16.mxu0 0
      %465 = vmatpush1.bf16.xpose.msra.mxu0 0
      %466 = vmatprep.subr.bf16.mxu0 0
      %467 = vmatpush1.bf16.xpose.msra.mxu0 0
      %468 = vmatprep.subr.bf16.mxu0 0
      %469 = vmatpush1.bf16.xpose.msra.mxu0 0
      %470 = vmatprep.subr.bf16.mxu0 0
      %471 = vmatpush1.bf16.xpose.msra.mxu0 0
      %472 = vmatprep.subr.bf16.mxu0 0
      %473 = vmatpush1.bf16.xpose.msra.mxu0 0
      %474 = vmatprep.subr.bf16.mxu0 0
      %475 = vmatpush1.bf16.xpose.msra.mxu0 0
      %476 = vmatprep.subr.bf16.mxu0 0
      %477 = vmatpush1.bf16.xpose.msra.mxu0 0
      %478 = vmatprep.subr.bf16.mxu0 0
      %479 = vmatpush1.bf16.xpose.msra.mxu0 0
      %480 = vmatprep.mubr.bf16.mxu0 0
      %481 = vmatmul.mubr.bf16.gmra.mrb[0].mxu0 %v443
      %v482 = vpop.f32.mrb[0].mxu0
      %v483 = vadd.f32 0.0, %v482
      %v484 = vpop.f32.mrb[0].mxu0
      %v485 = vpop.f32.mrb[0].mxu0
      %v486 = vpop.f32.mrb[0].mxu0
      %487 = vdwg.mxu0
      %v488 = vsel %vm321, -1e+09, %v483
      %v489 = vsel %vm328, %v488, -inf
      %490 = vmax.xlane.f32.xlu0 %v489
      %v491 = vpop.xlane.xlu0 %490
      %v492 = vsub.f32 %v488, %v491
      %v493 = vmul.f32 %v492, 1.442695
      %v494 = vpow.pop %v493
      %v495 = vsel %vm328, %v494, 0.0
      %496 = vadd.xlane.f32.xlu0 %v495
      %v497 = vpop.xlane.xlu0 %496
      %v498 = vrcp.pop %v497
      %v499 = vmul.f32 %v494, %v498
      %v500 = vpack.c.bf16 %v499, %v499
      %501 = vrot.lane.b32.xlu0 %v324, 56
      %v502 = vpop.permute.xlu0 %501
      %v504 = vsel %vm328, %v500, 0
      %v507 = vsel %vm393, %v502, 0
      %509 = vmatprep.subr.bf16.mxu0 0
      %510 = vmatpush1.bf16.msra.mxu0 %v507
      %511 = vmatprep.subr.bf16.mxu0 0
      %512 = vmatpush1.bf16.msra.mxu0 0
      %513 = vmatprep.subr.bf16.mxu0 0
      %514 = vmatpush1.bf16.msra.mxu0 0
      %515 = vmatprep.subr.bf16.mxu0 0
      %516 = vmatpush1.bf16.msra.mxu0 0
      %517 = vmatprep.subr.bf16.mxu0 0
      %518 = vmatpush1.bf16.msra.mxu0 0
      %519 = vmatprep.subr.bf16.mxu0 0
      %520 = vmatpush1.bf16.msra.mxu0 0
      %521 = vmatprep.subr.bf16.mxu0 0
      %522 = vmatpush1.bf16.msra.mxu0 0
      %523 = vmatprep.subr.bf16.mxu0 0
      %524 = vmatpush1.bf16.msra.mxu0 0
      %525 = vmatprep.subr.bf16.mxu0 0
      %526 = vmatpush1.bf16.msra.mxu0 0
      %527 = vmatprep.subr.bf16.mxu0 0
      %528 = vmatpush1.bf16.msra.mxu0 0
      %529 = vmatprep.subr.bf16.mxu0 0
      %530 = vmatpush1.bf16.msra.mxu0 0
      %531 = vmatprep.subr.bf16.mxu0 0
      %532 = vmatpush1.bf16.msra.mxu0 0
      %533 = vmatprep.subr.bf16.mxu0 0
      %534 = vmatpush1.bf16.msra.mxu0 0
      %535 = vmatprep.subr.bf16.mxu0 0
      %536 = vmatpush1.bf16.msra.mxu0 0
      %537 = vmatprep.subr.bf16.mxu0 0
      %538 = vmatpush1.bf16.msra.mxu0 0
      %539 = vmatprep.subr.bf16.mxu0 0
      %540 = vmatpush1.bf16.msra.mxu0 0
      %541 = vmatprep.mubr.bf16.mxu0 0
      %542 = vmatmul.mubr.bf16.gmra.mrb[0].mxu0 %v504
      %v543 = vpop.f32.mrb[0].mxu0
      %v544 = vadd.f32 0.0, %v543
      %v545 = vpop.f32.mrb[0].mxu0
      %v546 = vpop.f32.mrb[0].mxu0
      %v547 = vpop.f32.mrb[0].mxu0
      %548 = vdwg.mxu0
      %549 = vrot.lane.b32.xlu0 %v323, 112
      %v550 = vpop.permute.xlu0 %549
      %551 = vrot.lane.b32.xlu0 %v324, 80
      %v552 = vpop.permute.xlu0 %551
      %v554 = vsel %vm328, %v550, 0
      %v557 = vsel %vm328, %v552, 0
      %559 = vmatprep.subr.bf16.mxu0 0
      %560 = vmatpush1.bf16.xpose.msra.mxu0 %v557
      %561 = vmatprep.subr.bf16.mxu0 0
      %562 = vmatpush1.bf16.xpose.msra.mxu0 0
      %563 = vmatprep.subr.bf16.mxu0 0
      %564 = vmatpush1.bf16.xpose.msra.mxu0 0
      %565 = vmatprep.subr.bf16.mxu0 0
      %566 = vmatpush1.bf16.xpose.msra.mxu0 0
      %567 = vmatprep.subr.bf16.mxu0 0
      %568 = vmatpush1.bf16.xpose.msra.mxu0 0
      %569 = vmatprep.subr.bf16.mxu0 0
      %570 = vmatpush1.bf16.xpose.msra.mxu0 0
      %571 = vmatprep.subr.bf16.mxu0 0
      %572 = vmatpush1.bf16.xpose.msra.mxu0 0
      %573 = vmatprep.subr.bf16.mxu0 0
      %574 = vmatpush1.bf16.xpose.msra.mxu0 0
      %575 = vmatprep.subr.bf16.mxu0 0
      %576 = vmatpush1.bf16.xpose.msra.mxu0 0
      %577 = vmatprep.subr.bf16.mxu0 0
      %578 = vmatpush1.bf16.xpose.msra.mxu0 0
      %579 = vmatprep.subr.bf16.mxu0 0
      %580 = vmatpush1.bf16.xpose.msra.mxu0 0
      %581 = vmatprep.subr.bf16.mxu0 0
      %582 = vmatpush1.bf16.xpose.msra.mxu0 0
      %583 = vmatprep.subr.bf16.mxu0 0
      %584 = vmatpush1.bf16.xpose.msra.mxu0 0
      %585 = vmatprep.subr.bf16.mxu0 0
      %586 = vmatpush1.bf16.xpose.msra.mxu0 0
      %587 = vmatprep.subr.bf16.mxu0 0
      %588 = vmatpush1.bf16.xpose.msra.mxu0 0
      %589 = vmatprep.subr.bf16.mxu0 0
      %590 = vmatpush1.bf16.xpose.msra.mxu0 0
      %591 = vmatprep.mubr.bf16.mxu0 0
      %592 = vmatmul.mubr.bf16.gmra.mrb[0].mxu0 %v554
      %v593 = vpop.f32.mrb[0].mxu0
      %v594 = vadd.f32 0.0, %v593
      %v595 = vpop.f32.mrb[0].mxu0
      %v596 = vpop.f32.mrb[0].mxu0
      %v597 = vpop.f32.mrb[0].mxu0
      %598 = vdwg.mxu0
      %v599 = vsel %vm321, -1e+09, %v594
      %v600 = vsel %vm328, %v599, -inf
      %601 = vmax.xlane.f32.xlu0 %v600
      %v602 = vpop.xlane.xlu0 %601
      %v603 = vsub.f32 %v599, %v602
      %v604 = vmul.f32 %v603, 1.442695
      %v605 = vpow.pop %v604
      %v606 = vsel %vm328, %v605, 0.0
      %607 = vadd.xlane.f32.xlu0 %v606
      %v608 = vpop.xlane.xlu0 %607
      %v609 = vrcp.pop %v608
      %v610 = vmul.f32 %v605, %v609
      %v611 = vpack.c.bf16 %v610, %v610
      %612 = vrot.lane.b32.xlu0 %v324, 48
      %v613 = vpop.permute.xlu0 %612
      %v615 = vsel %vm328, %v611, 0
      %v618 = vsel %vm393, %v613, 0
      %620 = vmatprep.subr.bf16.mxu0 0
      %621 = vmatpush1.bf16.msra.mxu0 %v618
      %622 = vmatprep.subr.bf16.mxu0 0
      %623 = vmatpush1.bf16.msra.mxu0 0
      %624 = vmatprep.subr.bf16.mxu0 0
      %625 = vmatpush1.bf16.msra.mxu0 0
      %626 = vmatprep.subr.bf16.mxu0 0
      %627 = vmatpush1.bf16.msra.mxu0 0
      %628 = vmatprep.subr.bf16.mxu0 0
      %629 = vmatpush1.bf16.msra.mxu0 0
      %630 = vmatprep.subr.bf16.mxu0 0
      %631 = vmatpush1.bf16.msra.mxu0 0
      %632 = vmatprep.subr.bf16.mxu0 0
      %633 = vmatpush1.bf16.msra.mxu0 0
      %634 = vmatprep.subr.bf16.mxu0 0
      %635 = vmatpush1.bf16.msra.mxu0 0
      %636 = vmatprep.subr.bf16.mxu0 0
      %637 = vmatpush1.bf16.msra.mxu0 0
      %638 = vmatprep.subr.bf16.mxu0 0
      %639 = vmatpush1.bf16.msra.mxu0 0
      %640 = vmatprep.subr.bf16.mxu0 0
      %641 = vmatpush1.bf16.msra.mxu0 0
      %642 = vmatprep.subr.bf16.mxu0 0
      %643 = vmatpush1.bf16.msra.mxu0 0
      %644 = vmatprep.subr.bf16.mxu0 0
      %645 = vmatpush1.bf16.msra.mxu0 0
      %646 = vmatprep.subr.bf16.mxu0 0
      %647 = vmatpush1.bf16.msra.mxu0 0
      %648 = vmatprep.subr.bf16.mxu0 0
      %649 = vmatpush1.bf16.msra.mxu0 0
      %650 = vmatprep.subr.bf16.mxu0 0
      %651 = vmatpush1.bf16.msra.mxu0 0
      %652 = vmatprep.mubr.bf16.mxu0 0
      %653 = vmatmul.mubr.bf16.gmra.mrb[0].mxu0 %v615
      %v654 = vpop.f32.mrb[0].mxu0
      %v655 = vadd.f32 0.0, %v654
      %v656 = vpop.f32.mrb[0].mxu0
      %v657 = vpop.f32.mrb[0].mxu0
      %v658 = vpop.f32.mrb[0].mxu0
      %659 = vdwg.mxu0
      %660 = vrot.lane.b32.xlu0 %v323, 104
      %v661 = vpop.permute.xlu0 %660
      %662 = vrot.lane.b32.xlu0 %v324, 72
      %v663 = vpop.permute.xlu0 %662
      %v665 = vsel %vm328, %v661, 0
      %v668 = vsel %vm328, %v663, 0
      %670 = vmatprep.subr.bf16.mxu0 0
      %671 = vmatpush1.bf16.xpose.msra.mxu0 %v668
      %672 = vmatprep.subr.bf16.mxu0 0
      %673 = vmatpush1.bf16.xpose.msra.mxu0 0
      %674 = vmatprep.subr.bf16.mxu0 0
      %675 = vmatpush1.bf16.xpose.msra.mxu0 0
      %676 = vmatprep.subr.bf16.mxu0 0
      %677 = vmatpush1.bf16.xpose.msra.mxu0 0
      %678 = vmatprep.subr.bf16.mxu0 0
      %679 = vmatpush1.bf16.xpose.msra.mxu0 0
      %680 = vmatprep.subr.bf16.mxu0 0
      %681 = vmatpush1.bf16.xpose.msra.mxu0 0
      %682 = vmatprep.subr.bf16.mxu0 0
      %683 = vmatpush1.bf16.xpose.msra.mxu0 0
      %684 = vmatprep.subr.bf16.mxu0 0
      %685 = vmatpush1.bf16.xpose.msra.mxu0 0
      %686 = vmatprep.subr.bf16.mxu0 0
      %687 = vmatpush1.bf16.xpose.msra.mxu0 0
      %688 = vmatprep.subr.bf16.mxu0 0
      %689 = vmatpush1.bf16.xpose.msra.mxu0 0
      %690 = vmatprep.subr.bf16.mxu0 0
      %691 = vmatpush1.bf16.xpose.msra.mxu0 0
      %692 = vmatprep.subr.bf16.mxu0 0
      %693 = vmatpush1.bf16.xpose.msra.mxu0 0
      %694 = vmatprep.subr.bf16.mxu0 0
      %695 = vmatpush1.bf16.xpose.msra.mxu0 0
      %696 = vmatprep.subr.bf16.mxu0 0
      %697 = vmatpush1.bf16.xpose.msra.mxu0 0
      %698 = vmatprep.subr.bf16.mxu0 0
      %699 = vmatpush1.bf16.xpose.msra.mxu0 0
      %700 = vmatprep.subr.bf16.mxu0 0
      %701 = vmatpush1.bf16.xpose.msra.mxu0 0
      %702 = vmatprep.mubr.bf16.mxu0 0
      %703 = vmatmul.mubr.bf16.gmra.mrb[0].mxu0 %v665
      %v704 = vpop.f32.mrb[0].mxu0
      %v705 = vadd.f32 0.0, %v704
      %v706 = vpop.f32.mrb[0].mxu0
      %v707 = vpop.f32.mrb[0].mxu0
      %v708 = vpop.f32.mrb[0].mxu0
      %709 = vdwg.mxu0
      %v710 = vsel %vm321, -1e+09, %v705
      %v711 = vsel %vm328, %v710, -inf
      %712 = vmax.xlane.f32.xlu0 %v711
      %v713 = vpop.xlane.xlu0 %712
      %v714 = vsub.f32 %v710, %v713
      %v715 = vmul.f32 %v714, 1.442695
      %v716 = vpow.pop %v715
      %v717 = vsel %vm328, %v716, 0.0
      %718 = vadd.xlane.f32.xlu0 %v717
      %v719 = vpop.xlane.xlu0 %718
      %v720 = vrcp.pop %v719
      %v721 = vmul.f32 %v716, %v720
      %v722 = vpack.c.bf16 %v721, %v721
      %723 = vrot.lane.b32.xlu0 %v324, 40
      %v724 = vpop.permute.xlu0 %723
      %v726 = vsel %vm328, %v722, 0
      %v729 = vsel %vm393, %v724, 0
      %731 = vmatprep.subr.bf16.mxu0 0
      %732 = vmatpush1.bf16.msra.mxu0 %v729
      %733 = vmatprep.subr.bf16.mxu0 0
      %734 = vmatpush1.bf16.msra.mxu0 0
      %735 = vmatprep.subr.bf16.mxu0 0
      %736 = vmatpush1.bf16.msra.mxu0 0
      %737 = vmatprep.subr.bf16.mxu0 0
      %738 = vmatpush1.bf16.msra.mxu0 0
      %739 = vmatprep.subr.bf16.mxu0 0
      %740 = vmatpush1.bf16.msra.mxu0 0
      %741 = vmatprep.subr.bf16.mxu0 0
      %742 = vmatpush1.bf16.msra.mxu0 0
      %743 = vmatprep.subr.bf16.mxu0 0
      %744 = vmatpush1.bf16.msra.mxu0 0
      %745 = vmatprep.subr.bf16.mxu0 0
      %746 = vmatpush1.bf16.msra.mxu0 0
      %747 = vmatprep.subr.bf16.mxu0 0
      %748 = vmatpush1.bf16.msra.mxu0 0
      %749 = vmatprep.subr.bf16.mxu0 0
      %750 = vmatpush1.bf16.msra.mxu0 0
      %751 = vmatprep.subr.bf16.mxu0 0
      %752 = vmatpush1.bf16.msra.mxu0 0
      %753 = vmatprep.subr.bf16.mxu0 0
      %754 = vmatpush1.bf16.msra.mxu0 0
      %755 = vmatprep.subr.bf16.mxu0 0
      %756 = vmatpush1.bf16.msra.mxu0 0
      %757 = vmatprep.subr.bf16.mxu0 0
      %758 = vmatpush1.bf16.msra.mxu0 0
      %759 = vmatprep.subr.bf16.mxu0 0
      %760 = vmatpush1.bf16.msra.mxu0 0
      %761 = vmatprep.subr.bf16.mxu0 0
      %762 = vmatpush1.bf16.msra.mxu0 0
      %763 = vmatprep.mubr.bf16.mxu0 0
      %764 = vmatmul.mubr.bf16.gmra.mrb[0].mxu0 %v726
      %v765 = vpop.f32.mrb[0].mxu0
      %v766 = vadd.f32 0.0, %v765
      %v767 = vpop.f32.mrb[0].mxu0
      %v768 = vpop.f32.mrb[0].mxu0
      %v769 = vpop.f32.mrb[0].mxu0
      %770 = vdwg.mxu0
      %772 = vrot.lane.b32.xlu0 %v544, 8
      %v773 = vpop.permute.xlu0 %772
      %776 = vrot.lane.b32.xlu0 %v655, 16
      %v777 = vpop.permute.xlu0 %776
      %780 = vrot.lane.b32.xlu0 %v766, 24
      %v781 = vpop.permute.xlu0 %780
      %v783 = vsel %vm328, %v432, %v773
      %vm784 = vcmask 130048
      %v785 = vsel %vm784, %v783, %v777
      %vm786 = vcmask 195584
      %v787 = vsel %vm786, %v785, %v781
      %v788 = vpack.c.bf16 %v787, %v787
      %v789 = vld [vmem:[%s3] sm:$0xf]
      %v790 = vld [vmem:[%s3 + $0x4] sm:$0xf]
      %v791 = vld [vmem:[%s3 + $0x8] sm:$0xf]
      %v792 = vld [vmem:[%s3 + $0xc] sm:$0xf]
      %v793 = vld [vmem:[%s4] sm:$0x1]
      %v795 = vlaneseq
      %v796 = vshrl.u32 %v795, 7
      %v797 = vsub.s32 0, %v796
      %v798 = vrot.slane %v793, %v797
      %v804 = vunpack.c.l.b16 %v789
      %v805 = vunpack.c.l.b16 %v790
      %v806 = vunpack.c.l.b16 %v791
      %v807 = vunpack.c.l.b16 %v792
      %v808 = vpack.c.b16 %v805, %v804
      %v809 = vpack.c.b16 %v807, %v806
      %vm812 = vcmask 261120
      %v814 = vsel %vm812, %v788, 0
      %816 = vmatprep.subr.bf16.mxu0 0
      %817 = vmatpush1.bf16.msra.mxu0 %v808
      %818 = vmatprep.subr.bf16.mxu0 0
      %819 = vmatpush1.bf16.msra.mxu0 %v809
      %820 = vmatprep.subr.bf16.mxu0 0
      %821 = vmatpush1.bf16.msra.mxu0 0
      %822 = vmatprep.subr.bf16.mxu0 0
      %823 = vmatpush1.bf16.msra.mxu0 0
      %824 = vmatprep.subr.bf16.mxu0 0
      %825 = vmatpush1.bf16.msra.mxu0 0
      %826 = vmatprep.subr.bf16.mxu0 0
      %827 = vmatpush1.bf16.msra.mxu0 0
      %828 = vmatprep.subr.bf16.mxu0 0
      %829 = vmatpush1.bf16.msra.mxu0 0
      %830 = vmatprep.subr.bf16.mxu0 0
      %831 = vmatpush1.bf16.msra.mxu0 0
      %832 = vmatprep.subr.bf16.mxu0 0
      %833 = vmatpush1.bf16.msra.mxu0 0
      %834 = vmatprep.subr.bf16.mxu0 0
      %835 = vmatpush1.bf16.msra.mxu0 0
      %836 = vmatprep.subr.bf16.mxu0 0
      %837 = vmatpush1.bf16.msra.mxu0 0
      %838 = vmatprep.subr.bf16.mxu0 0
      %839 = vmatpush1.bf16.msra.mxu0 0
      %840 = vmatprep.subr.bf16.mxu0 0
      %841 = vmatpush1.bf16.msra.mxu0 0
      %842 = vmatprep.subr.bf16.mxu0 0
      %843 = vmatpush1.bf16.msra.mxu0 0
      %844 = vmatprep.subr.bf16.mxu0 0
      %845 = vmatpush1.bf16.msra.mxu0 0
      %846 = vmatprep.subr.bf16.mxu0 0
      %847 = vmatpush1.bf16.msra.mxu0 0
      %848 = vmatprep.mubr.bf16.mxu0 0
      %849 = vmatmul.mubr.bf16.gmra.mrb[0].mxu0 %v814
      %v850 = vpop.f32.mrb[0].mxu0
      %v851 = vadd.f32 %v798, %v850
      %v852 = vpop.f32.mrb[0].mxu0
      %v853 = vpop.f32.mrb[0].mxu0
      %v854 = vpop.f32.mrb[0].mxu0
      %855 = vdwg.mxu0
      %v856 = vadd.f32 %v851, %v308
      %857 = vadd.xlane.f32.xlu0 %v856
      %v858 = vpop.xlane.xlu0 %857
      %v859 = vmul.f32 %v858, 0.03125
      %v860 = vmul.f32 %v856, %v856
      %861 = vadd.xlane.f32.xlu0 %v860
      %v862 = vpop.xlane.xlu0 %861
      %v863 = vmul.f32 %v862, 0.03125
      %v864 = vmul.f32 %v859, %v859
      %v865 = vsub.f32 %v863, %v864
      %v866 = vsub.f32 %v856, %v859
      %v867 = vadd.f32 %v865, 1e-05
      %v868 = vrsqrt.pop %v867
      %v869 = vmul.f32 %v866, %v868
      %v870 = vld [vmem:[%s5] sm:$0x1]
      %v872 = vlaneseq
      %v873 = vshrl.u32 %v872, 7
      %v874 = vsub.s32 0, %v873
      %v875 = vrot.slane %v870, %v874
      %v877 = vmul.f32 %v869, %v875
      %v878 = vld [vmem:[%s6] sm:$0x1]
      %v880 = vlaneseq
      %v881 = vshrl.u32 %v880, 7
      %v882 = vsub.s32 0, %v881
      %v883 = vrot.slane %v878, %v882
      %v885 = vadd.f32 %v877, %v883
      %886 = vst [vmem:[%s304] sm:$0xff] %v885
      %p887 = scmp.lt.s32.totalorder %s18, 1
      %s888 = scalar_select %p887, %s18, 1
      %s889 = smul.addr %s888, 8
      %s890 = scalar_lea.vmem %s7, %s889
      // Predicated region
      $region49: #{gamma_gpt_forward.8} parent=47 // pred_check
        %p891 = pneg %p198
      $region50: #{gamma_gpt_forward.8} parent=47 // pred_check_branch
        %893 = sbr.rel (%p891) target = $region52
      $region51: #{gamma_gpt_forward.8} parent=47 // pred_region
        _
      $region52: #{gamma_gpt_forward.8} parent=47 // pred_fallthru
        _
    $region48: #{gamma_gpt_forward.8} parent=5 // pred_fallthru
      _
    %p894 = scmp.le.s32.totalorder 2, %s13
    // Predicated region
    $region53: #{gamma_gpt_forward.8} parent=5 // pred_check
      %p895 = pneg %p894
    $region54: #{gamma_gpt_forward.8} parent=5 // pred_check_branch
      %897 = sbr.rel (%p895) target = $region56
    $region55: #{gamma_gpt_forward.8} parent=5 // pred_region
      %s898 = ssub.s32 %s13, 2
      // Predicated region
      $region57: #{gamma_gpt_forward.8} parent=55 // pred_check
        %p899 = pneg %p204
      $region58: #{gamma_gpt_forward.8} parent=55 // pred_check_branch
        %901 = sbr.rel (%p899) target = $region60
      $region59: #{gamma_gpt_forward.8} parent=55 // pred_region
        %p902 = scmp.lt.s32.totalorder %s19, 1
        %s903 = scalar_select %p902, %s19, 1
        %s904 = smul.addr %s903, 8
        %s905 = scalar_lea.vmem %s7, %s904
      $region60: #{gamma_gpt_forward.8} parent=55 // pred_fallthru
        _
    $region56: #{gamma_gpt_forward.8} parent=5 // pred_fallthru
      _
  $region6: #{gamma_gpt_forward.8} parent=0 // loop_footer
    %s17 = sadd.s32 1, %s13
  $region7: #{gamma_gpt_forward.8} parent=0 // loop_footer_branch
    %12 = sbr.rel target = $region3
  $region8: #{gamma_gpt_forward.8} parent=0 // loop_exit
    _

</llo_original>
